<compile_context>
chip_gen: v7x
topology: tpu7x:2x2x1
jax: 0.10.0
libtpu: 0.0.40
codegen_flags: <defaults>
</compile_context>

<pallas_src>
import functools
import math

import jax
import jax.numpy as jnp
from jax.experimental import pallas as pl
from jax.experimental.pallas import tpu as pltpu

LN_EPS = 1e-5


def _round_up(x, m):
    return -(-x // m) * m


def _pad_rows(x, rows):
    return x if x.shape[0] == rows else jnp.pad(x, ((0, rows - x.shape[0]), (0, 0)))


def _pad_cols(x, cols):
    if x.shape[-1] == cols:
        return x
    pad = [(0, 0)] * (x.ndim - 1) + [(0, cols - x.shape[-1])]
    return jnp.pad(x, pad)


def _layernorm(x, gamma, beta):
    # LayerNorm over the last (feature / lane) axis, f32 math.
    mean = jnp.mean(x, axis=-1, keepdims=True)
    var = jnp.mean(jnp.square(x - mean), axis=-1, keepdims=True)
    return (x - mean) * jax.lax.rsqrt(var + LN_EPS) * gamma + beta


def _gelu_exact(x):
    # PyTorch nn.GELU() default = exact erf form.
    return 0.5 * x * (1.0 + jax.lax.erf(x * (1.0 / math.sqrt(2.0))))


def _disentangle_kernel(hsel_ref,                 # scalar-prefetch (k,) head->input table
                        x_ref,                    # (bm, in_dim)   matmul dtype
                        w0_ref, w1_ref, w2_ref,   # (in_dim,h) (h,h) (h,out_dim_p) matmul dtype
                        ln_ref,                   # (6, h) f32: b0,g0,be0,b1,g1,be1
                        b2_ref,                   # (1, out_dim_p) f32
                        out_ref,                  # (bm, out_dim_p) out dtype
                        *, approximate_gelu):
    del hsel_ref  # only used by the index_maps
    act = (lambda v: jax.nn.gelu(v, approximate=True)) if approximate_gelu else _gelu_exact

    ln = ln_ref[...]
    b0, g0, be0 = ln[0:1, :], ln[1:2, :], ln[2:3, :]
    b1, g1, be1 = ln[3:4, :], ln[4:5, :], ln[5:6, :]

    x = x_ref[...]

    # lin0: Linear -> LayerNorm -> GELU   (Dropout = identity at inference)
    z0 = jnp.dot(x, w0_ref[...], preferred_element_type=jnp.float32) + b0
    h0 = act(_layernorm(z0, g0, be0))

    # residual block (n_blocks = 1): Linear -> LayerNorm -> GELU, + residual
    z1 = jnp.dot(h0.astype(w1_ref.dtype), w1_ref[...],
                 preferred_element_type=jnp.float32) + b1
    h1 = act(_layernorm(z1, g1, be1)) + h0

    # lin1: Linear to out_dim
    out = jnp.dot(h1.astype(w2_ref.dtype), w2_ref[...],
                  preferred_element_type=jnp.float32) + b2_ref[...]
    out_ref[...] = out.astype(out_ref.dtype)


def _vmem_capacity_bytes():
    try:
        info = pltpu.get_tpu_info()
        cap = getattr(info, "vmem_capacity_bytes", None)
        if cap:
            return int(cap)
    except Exception:
        pass
    return 64 * 2 ** 20   # conservative fallback (v7x per-core VMEM)


def _vmem_estimate(bm, in_dim, h, out_dim_p, mm_bytes, out_bytes, weight_buffers):
    x_bytes = 2 * bm * in_dim * mm_bytes                                   # double-buffered x tile
    w_bytes = weight_buffers * (in_dim * h + h * h + h * out_dim_p) * mm_bytes
    ln_bytes = 2 * (6 * h + out_dim_p) * 4                                 # small per-head slabs
    o_bytes = 2 * bm * out_dim_p * out_bytes                               # double-buffered output
    tmp_bytes = bm * (3 * h + out_dim_p) * 4                               # f32 z0/h0/h1 + pre-cast out
    return x_bytes + w_bytes + ln_bytes + o_bytes + tmp_bytes


def _pack_params(all_params, matmul_dtype, out_dim_p):
    # Cacheable: for repeated calls with fixed params, hoist this out of the hot path.
    w0_s = jnp.stack([p["w0"] for p in all_params]).astype(matmul_dtype)            # (k, in_dim, h)
    w1_s = jnp.stack([p["w1"] for p in all_params]).astype(matmul_dtype)            # (k, h, h)
    w2_s = jnp.stack([_pad_cols(p["w2"], out_dim_p)
                      for p in all_params]).astype(matmul_dtype)                     # (k, h, out_dim_p)
    ln_s = jnp.stack([jnp.concatenate([p["b0"], p["g0"], p["be0"],
                                       p["b1"], p["g1"], p["be1"]], axis=0)
                      for p in all_params]).astype(jnp.float32)                      # (k, 6, h)
    b2_s = jnp.stack([_pad_cols(p["b2"], out_dim_p)
                      for p in all_params]).astype(jnp.float32)                      # (k, 1, out_dim_p)
    return w0_s, w1_s, w2_s, ln_s, b2_s


def disentangle_forward(x_a, x_b, all_params, *, matmul_dtype=jnp.bfloat16,
                        out_dtype=jnp.float32, approximate_gelu=True):
    """Reproduces disentangle.forward: list of window_k tensors (B, out_dim).

    One fused pallas_call over grid (head, batch-tile) (or flipped if that is
    cheaper in HBM bytes).  `matmul_dtype` controls only matmul operand dtype
    (accumulation and all elementwise math stay f32).
    """
    k = len(all_params)
    B, in_dim = x_a.shape
    assert x_b.shape == (B, in_dim)
    h = all_params[0]["w0"].shape[1]
    out_dim = all_params[0]["w2"].shape[1]
    out_dim_p = _round_up(out_dim, 128)     # lane-dense stores (avoid masked vst)

    mm_bytes = jnp.dtype(matmul_dtype).itemsize
    out_bytes = jnp.dtype(out_dtype).itemsize

    vmem_cap = _vmem_capacity_bytes()
    budget = int(vmem_cap * 0.82)           # ~18% headroom for Mosaic scratch/semaphores

    # Batch tile: largest candidate (<=512) whose blocks fit the VMEM budget.
    bm_cap = min(512, _round_up(max(B, 1), 16))
    candidates = sorted({512, 256, 128, 64, 32, 16, bm_cap}, reverse=True)
    bm = 16
    for cand in candidates:
        if cand > bm_cap:
            continue
        if _vmem_estimate(cand, in_dim, h, out_dim_p, mm_bytes, out_bytes, 2) <= budget:
            bm = cand
            break
    # TODO(synk): if even bm=16 does not fit (very large in_dim*h), add a K (in_dim)
    # reduction grid axis ("arbitrary", innermost) with an f32 z0 accumulator instead
    # of shrinking bm further.
    Bp = _round_up(B, bm)
    nbt = Bp // bm

    # Input slabs: slot 0 = x_a, slot 1 = x_b; head->slot routing via scalar prefetch.
    # NOTE: for repeated calls this pad/stack/cast should be hoisted/cached by the caller.
    x_stack = jnp.stack([_pad_rows(x_a, Bp), _pad_rows(x_b, Bp)]).astype(matmul_dtype)  # (2, Bp, in_dim)
    head_sel = jnp.array([0] + [1] * (k - 1), dtype=jnp.int32)                          # (k,)

    w0_s, w1_s, w2_s, ln_s, b2_s = _pack_params(all_params, matmul_dtype, out_dim_p)

    # --- choose grid order by total HBM traffic -------------------------------------
    W_bytes = (in_dim * h + h * h + h * out_dim_p) * mm_bytes      # one head's weights
    head_outer_traffic = k * Bp * in_dim * mm_bytes + k * W_bytes              # x re-read per head
    batch_outer_traffic = 2 * Bp * in_dim * mm_bytes + nbt * k * W_bytes       # weights re-read per tile
    # Bias toward head-outer: weights revisited (one DMA per head) and v7x megacore
    # shards the outer axis -> disjoint weight sets per TensorCore.
    head_outer = head_outer_traffic <= 1.1 * batch_outer_traffic

    if head_outer:
        grid = (k, nbt)
        xmap = lambda hd, bi, hs: (hs[hd], bi, 0)
        wmap = lambda hd, bi, hs: (hd, 0, 0)
        omap = lambda hd, bi, hs: (hd, bi, 0)
    else:
        grid = (nbt, k)
        xmap = lambda bi, hd, hs: (hs[hd], bi, 0)
        wmap = lambda bi, hd, hs: (hd, 0, 0)
        omap = lambda bi, hd, hs: (hd, bi, 0)

    flops = 2 * k * Bp * (in_dim * h + h * h + h * out_dim_p)
    transcendentals = k * Bp * (2 * h + 2)                        # gelu x2h, rsqrt x2 per row
    bytes_accessed = int(min(head_outer_traffic, batch_outer_traffic)
                         + (ln_s.size + b2_s.size) * 4
                         + k * Bp * out_dim_p * out_bytes)

    kernel = functools.partial(_disentangle_kernel, approximate_gelu=approximate_gelu)

    def build_call(single_buffer_weights):
        wb = 1 if single_buffer_weights else 2
        est = _vmem_estimate(bm, in_dim, h, out_dim_p, mm_bytes, out_bytes, wb)
        vmem_limit = int(max(16 * 2 ** 20, min(budget, est + (4 << 20))))
        wkw = dict(pipeline_mode=pl.Buffered(1)) if single_buffer_weights else {}
        return pl.pallas_call(
            kernel,
            out_shape=jax.ShapeDtypeStruct((k, Bp, out_dim_p), out_dtype),
            grid_spec=pltpu.PrefetchScalarGridSpec(
                num_scalar_prefetch=1,
                grid=grid,
                in_specs=[
                    pl.BlockSpec((pl.Squeezed(), bm, in_dim), xmap),
                    pl.BlockSpec((pl.Squeezed(), in_dim, h), wmap, **wkw),
                    pl.BlockSpec((pl.Squeezed(), h, h), wmap, **wkw),
                    pl.BlockSpec((pl.Squeezed(), h, out_dim_p), wmap, **wkw),
                    pl.BlockSpec((pl.Squeezed(), 6, h), wmap),
                    pl.BlockSpec((pl.Squeezed(), 1, out_dim_p), wmap),
                ],
                out_specs=pl.BlockSpec((pl.Squeezed(), bm, out_dim_p), omap),
            ),
            compiler_params=pltpu.CompilerParams(
                dimension_semantics=("parallel", "parallel"),
                vmem_limit_bytes=vmem_limit),
            cost_estimate=pl.CostEstimate(flops=flops,
                                          transcendentals=transcendentals,
                                          bytes_accessed=bytes_accessed),
        )

    # Weights only change on head boundaries when head is the outer grid axis, so a
    # single VMEM buffer (one exposed DMA per head) halves the weight footprint.
    want_single = head_outer
    try:
        out = build_call(want_single)(head_sel, x_stack, w0_s, w1_s, w2_s, ln_s, b2_s)
    except Exception:
        if not want_single:
            raise
        out = build_call(False)(head_sel, x_stack, w0_s, w1_s, w2_s, ln_s, b2_s)

    return [out[i, :B, :out_dim] for i in range(k)]


# -----------------------------------------------------------------------------------
# deterministic parameter construction + pure-JAX reference for verification
# -----------------------------------------------------------------------------------
def init_mlp_params(key, in_dim, h, out_dim):
    ks = jax.random.split(key, 3)

    def lin(kk, fan_in, fan_out):
        bound = 1.0 / math.sqrt(fan_in)
        kw, kb = jax.random.split(kk)
        w = jax.random.uniform(kw, (fan_in, fan_out), jnp.float32, -bound, bound)
        b = jax.random.uniform(kb, (1, fan_out), jnp.float32, -bound, bound)
        return w, b

    w0, b0 = lin(ks[0], in_dim, h)
    w1, b1 = lin(ks[1], h, h)
    w2, b2 = lin(ks[2], h, out_dim)
    return dict(
        w0=w0, b0=b0, g0=jnp.ones((1, h), jnp.float32), be0=jnp.zeros((1, h), jnp.float32),
        w1=w1, b1=b1, g1=jnp.ones((1, h), jnp.float32), be1=jnp.zeros((1, h), jnp.float32),
        w2=w2, b2=b2,
    )


def mlp_reference(x, p, approximate=False):
    hi = jax.lax.Precision.HIGHEST

    def ln(v, g, b):
        m = jnp.mean(v, -1, keepdims=True)
        s = jnp.mean(jnp.square(v - m), -1, keepdims=True)
        return (v - m) * jax.lax.rsqrt(s + LN_EPS) * g + b

    if approximate:
        gelu = lambda v: jax.nn.gelu(v, approximate=True)
    else:
        gelu = lambda v: 0.5 * v * (1.0 + jax.lax.erf(v / math.sqrt(2.0)))

    h0 = gelu(ln(jnp.dot(x, p["w0"], precision=hi) + p["b0"], p["g0"], p["be0"]))
    h1 = gelu(ln(jnp.dot(h0, p["w1"], precision=hi) + p["b1"], p["g1"], p["be1"])) + h0
    return jnp.dot(h1, p["w2"], precision=hi) + p["b2"]


if __name__ == "__main__":
    # Small shapes consistent with the module (scaled-down in_dim/h/out_dim).
    B, IN_DIM, H, OUT_DIM, WINDOW_K = 8, 256, 128, 128, 4

    root = jax.random.PRNGKey(0)
    kx_a, kx_b, kp = jax.random.split(root, 3)
    x_a = jax.random.normal(kx_a, (B, IN_DIM), jnp.float32)
    x_b = jax.random.normal(kx_b, (B, IN_DIM), jnp.float32)
    all_params = [init_mlp_params(k, IN_DIM, H, OUT_DIM)
                  for k in jax.random.split(kp, WINDOW_K)]

    refs_exact = [mlp_reference(x_a, all_params[0])] + \
                 [mlp_reference(x_b, all_params[i]) for i in range(1, WINDOW_K)]
    refs_tanh = [mlp_reference(x_a, all_params[0], approximate=True)] + \
                [mlp_reference(x_b, all_params[i], approximate=True)
                 for i in range(1, WINDOW_K)]

    # 1) exactness check: f32 matmul path, exact-erf GELU
    outs = disentangle_forward(x_a, x_b, all_params,
                               matmul_dtype=jnp.float32, approximate_gelu=False)
    outs = [jax.block_until_ready(o) for o in outs]
    for o, r in zip(outs, refs_exact):
        assert o.shape == (B, OUT_DIM)
        assert jnp.allclose(o, r, atol=1e-3, rtol=1e-3), float(jnp.max(jnp.abs(o - r)))

    # 2) performance default: bf16 matmul operands + tanh GELU (f32 accumulation / LN)
    outs = disentangle_forward(x_a, x_b, all_params)
    outs = [jax.block_until_ready(o) for o in outs]
    for o, r in zip(outs, refs_tanh):
        assert o.shape == (B, OUT_DIM)
        assert jnp.allclose(o, r, atol=5e-2, rtol=5e-2), float(jnp.max(jnp.abs(o - r)))

    # 3) ragged shapes + bf16 output: exercises batch / out_dim padding and k=3 routing.
    B2, IN2, H2, OUT2, K2 = 5, 192, 64, 96, 3
    k2a, k2b, k2p = jax.random.split(jax.random.PRNGKey(1), 3)
    y_a = jax.random.normal(k2a, (B2, IN2), jnp.float32)
    y_b = jax.random.normal(k2b, (B2, IN2), jnp.float32)
    params2 = [init_mlp_params(kk, IN2, H2, OUT2) for kk in jax.random.split(k2p, K2)]
    refs2 = [mlp_reference(y_a, params2[0], approximate=True)] + \
            [mlp_reference(y_b, params2[i], approximate=True) for i in range(1, K2)]
    outs2 = disentangle_forward(y_a, y_b, params2, out_dtype=jnp.bfloat16)
    outs2 = [jax.block_until_ready(o) for o in outs2]
    for o, r in zip(outs2, refs2):
        assert o.shape == (B2, OUT2)
        d = jnp.max(jnp.abs(o.astype(jnp.float32) - r))
        assert jnp.allclose(o.astype(jnp.float32), r, atol=1e-1, rtol=1e-1), float(d)

    # TODO(synk): the repo's MLP class is not included in the prompt; the MindEye-style
    # Linear->LayerNorm->GELU(->Dropout) structure above is the assumed definition
    # (Dropout is identity at inference).
    print("KERNEL_OK")
</pallas_src>

<mosaic_0001>
module attributes {stable_mosaic.version = 11 : i64} {
  func.func @_disentangle_kernel(%arg0: i32, %arg1: i32, %arg2: memref<4xi32, #tpu.memory_space<smem>>, %arg3: memref<1x16x256xf32, #tpu.memory_space<vmem>>, %arg4: memref<1x256x128xf32, #tpu.memory_space<vmem>>, %arg5: memref<1x128x128xf32, #tpu.memory_space<vmem>>, %arg6: memref<1x128x128xf32, #tpu.memory_space<vmem>>, %arg7: memref<1x6x128xf32, #tpu.memory_space<vmem>>, %arg8: memref<1x1x128xf32, #tpu.memory_space<vmem>>, %arg9: memref<1x16x128xf32, #tpu.memory_space<vmem>>) attributes {dimension_semantics = [#tpu.dimension_semantics<parallel>, #tpu.dimension_semantics<parallel>], iteration_bounds = array<i64: 4, 1>, scalar_prefetch = 1 : i64, scratch_operands = 0 : i64, tpu.core_type = #tpu.core_type<tc>, window_params = [{transform_indices = @transform_0, window_bounds = array<i64: 1, 16, 256>}, {pipeline_mode = #tpu.pipeline_mode<synchronous>, transform_indices = @transform_1, window_bounds = array<i64: 1, 256, 128>}, {pipeline_mode = #tpu.pipeline_mode<synchronous>, transform_indices = @transform_2, window_bounds = array<i64: 1, 128, 128>}, {pipeline_mode = #tpu.pipeline_mode<synchronous>, transform_indices = @transform_3, window_bounds = array<i64: 1, 128, 128>}, {transform_indices = @transform_4, window_bounds = array<i64: 1, 6, 128>}, {transform_indices = @transform_5, window_bounds = array<i64: 1, 1, 128>}, {transform_indices = @transform_6, window_bounds = array<i64: 1, 16, 128>}]} {
    %c0 = arith.constant 0 : index
    %c0_0 = arith.constant 0 : index
    %c0_1 = arith.constant 0 : index
    %0 = vector.load %arg7[%c0, %c0_0, %c0_1] : memref<1x6x128xf32, #tpu.memory_space<vmem>>, vector<1x6x128xf32>
    %1 = vector.shape_cast %0 : vector<1x6x128xf32> to vector<6x128xf32>
    %2 = vector.extract_strided_slice %1 {offsets = [0, 0], sizes = [1, 128], strides = [1, 1]} : vector<6x128xf32> to vector<1x128xf32>
    %3 = vector.extract_strided_slice %1 {offsets = [1, 0], sizes = [1, 128], strides = [1, 1]} : vector<6x128xf32> to vector<1x128xf32>
    %4 = vector.extract_strided_slice %1 {offsets = [2, 0], sizes = [1, 128], strides = [1, 1]} : vector<6x128xf32> to vector<1x128xf32>
    %5 = vector.extract_strided_slice %1 {offsets = [3, 0], sizes = [1, 128], strides = [1, 1]} : vector<6x128xf32> to vector<1x128xf32>
    %6 = vector.extract_strided_slice %1 {offsets = [4, 0], sizes = [1, 128], strides = [1, 1]} : vector<6x128xf32> to vector<1x128xf32>
    %7 = vector.extract_strided_slice %1 {offsets = [5, 0], sizes = [1, 128], strides = [1, 1]} : vector<6x128xf32> to vector<1x128xf32>
    %c0_2 = arith.constant 0 : index
    %c0_3 = arith.constant 0 : index
    %c0_4 = arith.constant 0 : index
    %8 = vector.load %arg3[%c0_2, %c0_3, %c0_4] : memref<1x16x256xf32, #tpu.memory_space<vmem>>, vector<1x16x256xf32>
    %9 = vector.shape_cast %8 : vector<1x16x256xf32> to vector<16x256xf32>
    %c0_5 = arith.constant 0 : index
    %c0_6 = arith.constant 0 : index
    %c0_7 = arith.constant 0 : index
    %10 = vector.load %arg4[%c0_5, %c0_6, %c0_7] : memref<1x256x128xf32, #tpu.memory_space<vmem>>, vector<1x256x128xf32>
    %11 = vector.shape_cast %10 : vector<1x256x128xf32> to vector<256x128xf32>
    %cst = arith.constant dense<0.000000e+00> : vector<16x128xf32>
    %12 = tpu.matmul %9, %11, %cst {dimension_numbers = #tpu.dot_dimension_numbers<[1], [0], [0], [1], [0, 0, 1, 1], [], []>} : vector<16x256xf32>, vector<256x128xf32>, vector<16x128xf32> -> vector<16x128xf32>
    %13 = vector.broadcast %2 : vector<1x128xf32> to vector<16x128xf32>
    %14 = arith.addf %12, %13 : vector<16x128xf32>
    %cst_8 = arith.constant dense<0.000000e+00> : vector<16xf32>
    %15 = vector.multi_reduction <add>, %14, %cst_8 [1] : vector<16x128xf32> to vector<16xf32>
    %16 = vector.shape_cast %15 : vector<16xf32> to vector<16x1xf32>
    %cst_9 = arith.constant 1.280000e+02 : f32
    %17 = vector.broadcast %cst_9 : f32 to vector<16x1xf32>
    %18 = arith.divf %16, %17 : vector<16x1xf32>
    %19 = vector.broadcast %18 : vector<16x1xf32> to vector<16x128xf32>
    %20 = arith.subf %14, %19 : vector<16x128xf32>
    %21 = arith.mulf %20, %20 : vector<16x128xf32>
    %cst_10 = arith.constant dense<0.000000e+00> : vector<16xf32>
    %22 = vector.multi_reduction <add>, %21, %cst_10 [1] : vector<16x128xf32> to vector<16xf32>
    %23 = vector.shape_cast %22 : vector<16xf32> to vector<16x1xf32>
    %cst_11 = arith.constant 1.280000e+02 : f32
    %24 = vector.broadcast %cst_11 : f32 to vector<16x1xf32>
    %25 = arith.divf %23, %24 : vector<16x1xf32>
    %26 = vector.broadcast %18 : vector<16x1xf32> to vector<16x128xf32>
    %27 = arith.subf %14, %26 : vector<16x128xf32>
    %cst_12 = arith.constant 9.99999974E-6 : f32
    %28 = vector.broadcast %cst_12 : f32 to vector<16x1xf32>
    %29 = arith.addf %25, %28 : vector<16x1xf32>
    %30 = math.rsqrt %29 : vector<16x1xf32>
    %31 = vector.broadcast %30 : vector<16x1xf32> to vector<16x128xf32>
    %32 = arith.mulf %27, %31 : vector<16x128xf32>
    %33 = vector.broadcast %3 : vector<1x128xf32> to vector<16x128xf32>
    %34 = arith.mulf %32, %33 : vector<16x128xf32>
    %35 = vector.broadcast %4 : vector<1x128xf32> to vector<16x128xf32>
    %36 = arith.addf %34, %35 : vector<16x128xf32>
    %cst_13 = arith.constant 5.000000e-01 : f32
    %37 = vector.broadcast %cst_13 : f32 to vector<16x128xf32>
    %38 = arith.mulf %37, %36 : vector<16x128xf32>
    %cst_14 = arith.constant 0.707106769 : f32
    %39 = vector.broadcast %cst_14 : f32 to vector<16x128xf32>
    %40 = arith.mulf %36, %39 : vector<16x128xf32>
    %41 = math.erf %40 : vector<16x128xf32>
    %cst_15 = arith.constant 1.000000e+00 : f32
    %42 = vector.broadcast %cst_15 : f32 to vector<16x128xf32>
    %43 = arith.addf %42, %41 : vector<16x128xf32>
    %44 = arith.mulf %38, %43 : vector<16x128xf32>
    %c0_16 = arith.constant 0 : index
    %c0_17 = arith.constant 0 : index
    %c0_18 = arith.constant 0 : index
    %45 = vector.load %arg5[%c0_16, %c0_17, %c0_18] : memref<1x128x128xf32, #tpu.memory_space<vmem>>, vector<1x128x128xf32>
    %46 = vector.shape_cast %45 : vector<1x128x128xf32> to vector<128x128xf32>
    %cst_19 = arith.constant dense<0.000000e+00> : vector<16x128xf32>
    %47 = tpu.matmul %44, %46, %cst_19 {dimension_numbers = #tpu.dot_dimension_numbers<[1], [0], [0], [1], [0, 0, 1, 1], [], []>} : vector<16x128xf32>, vector<128x128xf32>, vector<16x128xf32> -> vector<16x128xf32>
    %48 = vector.broadcast %5 : vector<1x128xf32> to vector<16x128xf32>
    %49 = arith.addf %47, %48 : vector<16x128xf32>
    %cst_20 = arith.constant dense<0.000000e+00> : vector<16xf32>
    %50 = vector.multi_reduction <add>, %49, %cst_20 [1] : vector<16x128xf32> to vector<16xf32>
    %51 = vector.shape_cast %50 : vector<16xf32> to vector<16x1xf32>
    %cst_21 = arith.constant 1.280000e+02 : f32
    %52 = vector.broadcast %cst_21 : f32 to vector<16x1xf32>
    %53 = arith.divf %51, %52 : vector<16x1xf32>
    %54 = vector.broadcast %53 : vector<16x1xf32> to vector<16x128xf32>
    %55 = arith.subf %49, %54 : vector<16x128xf32>
    %56 = arith.mulf %55, %55 : vector<16x128xf32>
    %cst_22 = arith.constant dense<0.000000e+00> : vector<16xf32>
    %57 = vector.multi_reduction <add>, %56, %cst_22 [1] : vector<16x128xf32> to vector<16xf32>
    %58 = vector.shape_cast %57 : vector<16xf32> to vector<16x1xf32>
    %cst_23 = arith.constant 1.280000e+02 : f32
    %59 = vector.broadcast %cst_23 : f32 to vector<16x1xf32>
    %60 = arith.divf %58, %59 : vector<16x1xf32>
    %61 = vector.broadcast %53 : vector<16x1xf32> to vector<16x128xf32>
    %62 = arith.subf %49, %61 : vector<16x128xf32>
    %cst_24 = arith.constant 9.99999974E-6 : f32
    %63 = vector.broadcast %cst_24 : f32 to vector<16x1xf32>
    %64 = arith.addf %60, %63 : vector<16x1xf32>
    %65 = math.rsqrt %64 : vector<16x1xf32>
    %66 = vector.broadcast %65 : vector<16x1xf32> to vector<16x128xf32>
    %67 = arith.mulf %62, %66 : vector<16x128xf32>
    %68 = vector.broadcast %6 : vector<1x128xf32> to vector<16x128xf32>
    %69 = arith.mulf %67, %68 : vector<16x128xf32>
    %70 = vector.broadcast %7 : vector<1x128xf32> to vector<16x128xf32>
    %71 = arith.addf %69, %70 : vector<16x128xf32>
    %cst_25 = arith.constant 5.000000e-01 : f32
    %72 = vector.broadcast %cst_25 : f32 to vector<16x128xf32>
    %73 = arith.mulf %72, %71 : vector<16x128xf32>
    %cst_26 = arith.constant 0.707106769 : f32
    %74 = vector.broadcast %cst_26 : f32 to vector<16x128xf32>
    %75 = arith.mulf %71, %74 : vector<16x128xf32>
    %76 = math.erf %75 : vector<16x128xf32>
    %cst_27 = arith.constant 1.000000e+00 : f32
    %77 = vector.broadcast %cst_27 : f32 to vector<16x128xf32>
    %78 = arith.addf %77, %76 : vector<16x128xf32>
    %79 = arith.mulf %73, %78 : vector<16x128xf32>
    %80 = arith.addf %79, %44 : vector<16x128xf32>
    %c0_28 = arith.constant 0 : index
    %c0_29 = arith.constant 0 : index
    %c0_30 = arith.constant 0 : index
    %81 = vector.load %arg6[%c0_28, %c0_29, %c0_30] : memref<1x128x128xf32, #tpu.memory_space<vmem>>, vector<1x128x128xf32>
    %82 = vector.shape_cast %81 : vector<1x128x128xf32> to vector<128x128xf32>
    %cst_31 = arith.constant dense<0.000000e+00> : vector<16x128xf32>
    %83 = tpu.matmul %80, %82, %cst_31 {dimension_numbers = #tpu.dot_dimension_numbers<[1], [0], [0], [1], [0, 0, 1, 1], [], []>} : vector<16x128xf32>, vector<128x128xf32>, vector<16x128xf32> -> vector<16x128xf32>
    %c0_32 = arith.constant 0 : index
    %c0_33 = arith.constant 0 : index
    %c0_34 = arith.constant 0 : index
    %84 = vector.load %arg8[%c0_32, %c0_33, %c0_34] : memref<1x1x128xf32, #tpu.memory_space<vmem>>, vector<1x1x128xf32>
    %85 = vector.shape_cast %84 : vector<1x1x128xf32> to vector<1x128xf32>
    %86 = vector.broadcast %85 : vector<1x128xf32> to vector<16x128xf32>
    %87 = arith.addf %83, %86 : vector<16x128xf32>
    %c0_35 = arith.constant 0 : index
    %c0_36 = arith.constant 0 : index
    %c0_37 = arith.constant 0 : index
    %88 = vector.load %arg9[%c0_35, %c0_36, %c0_37] : memref<1x16x128xf32, #tpu.memory_space<vmem>>, vector<1x16x128xf32>
    %89 = vector.shape_cast %88 : vector<1x16x128xf32> to vector<16x128xf32>
    %90 = vector.shape_cast %87 : vector<16x128xf32> to vector<1x16x128xf32>
    tpu.vector_store %arg9[%c0_35, %c0_36, %c0_37], %90 {strides = array<i32>} : memref<1x16x128xf32, #tpu.memory_space<vmem>>, vector<1x16x128xf32>,
    return
  }
  func.func @transform_0(%arg0: i32, %arg1: i32, %arg2: memref<4xi32, #tpu.memory_space<smem>>) -> (i32, i32, i32) {
    %0 = arith.index_cast %arg0 : i32 to index
    %1 = memref.load %arg2[%0] : memref<4xi32, #tpu.memory_space<smem>>
    %c0_i32 = arith.constant 0 : i32
    %c0_i32_0 = arith.constant 0 : i32
    return %1, %arg1, %c0_i32 : i32, i32, i32
  }
  func.func @transform_1(%arg0: i32, %arg1: i32, %arg2: memref<4xi32, #tpu.memory_space<smem>>) -> (i32, i32, i32) {
    %c0_i32 = arith.constant 0 : i32
    %c0_i32_0 = arith.constant 0 : i32
    %c0_i32_1 = arith.constant 0 : i32
    return %arg0, %c0_i32, %c0_i32_0 : i32, i32, i32
  }
  func.func @transform_2(%arg0: i32, %arg1: i32, %arg2: memref<4xi32, #tpu.memory_space<smem>>) -> (i32, i32, i32) {
    %c0_i32 = arith.constant 0 : i32
    %c0_i32_0 = arith.constant 0 : i32
    %c0_i32_1 = arith.constant 0 : i32
    return %arg0, %c0_i32, %c0_i32_0 : i32, i32, i32
  }
  func.func @transform_3(%arg0: i32, %arg1: i32, %arg2: memref<4xi32, #tpu.memory_space<smem>>) -> (i32, i32, i32) {
    %c0_i32 = arith.constant 0 : i32
    %c0_i32_0 = arith.constant 0 : i32
    %c0_i32_1 = arith.constant 0 : i32
    return %arg0, %c0_i32, %c0_i32_0 : i32, i32, i32
  }
  func.func @transform_4(%arg0: i32, %arg1: i32, %arg2: memref<4xi32, #tpu.memory_space<smem>>) -> (i32, i32, i32) {
    %c0_i32 = arith.constant 0 : i32
    %c0_i32_0 = arith.constant 0 : i32
    %c0_i32_1 = arith.constant 0 : i32
    return %arg0, %c0_i32, %c0_i32_0 : i32, i32, i32
  }
  func.func @transform_5(%arg0: i32, %arg1: i32, %arg2: memref<4xi32, #tpu.memory_space<smem>>) -> (i32, i32, i32) {
    %c0_i32 = arith.constant 0 : i32
    %c0_i32_0 = arith.constant 0 : i32
    %c0_i32_1 = arith.constant 0 : i32
    return %arg0, %c0_i32, %c0_i32_0 : i32, i32, i32
  }
  func.func @transform_6(%arg0: i32, %arg1: i32, %arg2: memref<4xi32, #tpu.memory_space<smem>>) -> (i32, i32, i32) {
    %c0_i32 = arith.constant 0 : i32
    %c0_i32_0 = arith.constant 0 : i32
    return %arg0, %arg1, %c0_i32 : i32, i32, i32
  }
}

module attributes {stable_mosaic.version = 11 : i64} {
  func.func @_disentangle_kernel(%arg0: i32, %arg1: i32, %arg2: memref<4xi32, #tpu.memory_space<smem>>, %arg3: memref<1x16x256xf32, #tpu.memory_space<vmem>>, %arg4: memref<1x256x128xf32, #tpu.memory_space<vmem>>, %arg5: memref<1x128x128xf32, #tpu.memory_space<vmem>>, %arg6: memref<1x128x128xf32, #tpu.memory_space<vmem>>, %arg7: memref<1x6x128xf32, #tpu.memory_space<vmem>>, %arg8: memref<1x1x128xf32, #tpu.memory_space<vmem>>, %arg9: memref<1x16x128xf32, #tpu.memory_space<vmem>>) attributes {dimension_semantics = [#tpu.dimension_semantics<parallel>, #tpu.dimension_semantics<parallel>], iteration_bounds = array<i64: 4, 1>, scalar_prefetch = 1 : i64, scratch_operands = 0 : i64, tpu.core_type = #tpu.core_type<tc>, window_params = [{transform_indices = @transform_0, window_bounds = array<i64: 1, 16, 256>}, {transform_indices = @transform_1, window_bounds = array<i64: 1, 256, 128>}, {transform_indices = @transform_2, window_bounds = array<i64: 1, 128, 128>}, {transform_indices = @transform_3, window_bounds = array<i64: 1, 128, 128>}, {transform_indices = @transform_4, window_bounds = array<i64: 1, 6, 128>}, {transform_indices = @transform_5, window_bounds = array<i64: 1, 1, 128>}, {transform_indices = @transform_6, window_bounds = array<i64: 1, 16, 128>}]} {
    %c0 = arith.constant 0 : index
    %c0_0 = arith.constant 0 : index
    %c0_1 = arith.constant 0 : index
    %0 = vector.load %arg7[%c0, %c0_0, %c0_1] : memref<1x6x128xf32, #tpu.memory_space<vmem>>, vector<1x6x128xf32>
    %1 = vector.shape_cast %0 : vector<1x6x128xf32> to vector<6x128xf32>
    %2 = vector.extract_strided_slice %1 {offsets = [0, 0], sizes = [1, 128], strides = [1, 1]} : vector<6x128xf32> to vector<1x128xf32>
    %3 = vector.extract_strided_slice %1 {offsets = [1, 0], sizes = [1, 128], strides = [1, 1]} : vector<6x128xf32> to vector<1x128xf32>
    %4 = vector.extract_strided_slice %1 {offsets = [2, 0], sizes = [1, 128], strides = [1, 1]} : vector<6x128xf32> to vector<1x128xf32>
    %5 = vector.extract_strided_slice %1 {offsets = [3, 0], sizes = [1, 128], strides = [1, 1]} : vector<6x128xf32> to vector<1x128xf32>
    %6 = vector.extract_strided_slice %1 {offsets = [4, 0], sizes = [1, 128], strides = [1, 1]} : vector<6x128xf32> to vector<1x128xf32>
    %7 = vector.extract_strided_slice %1 {offsets = [5, 0], sizes = [1, 128], strides = [1, 1]} : vector<6x128xf32> to vector<1x128xf32>
    %c0_2 = arith.constant 0 : index
    %c0_3 = arith.constant 0 : index
    %c0_4 = arith.constant 0 : index
    %8 = vector.load %arg3[%c0_2, %c0_3, %c0_4] : memref<1x16x256xf32, #tpu.memory_space<vmem>>, vector<1x16x256xf32>
    %9 = vector.shape_cast %8 : vector<1x16x256xf32> to vector<16x256xf32>
    %c0_5 = arith.constant 0 : index
    %c0_6 = arith.constant 0 : index
    %c0_7 = arith.constant 0 : index
    %10 = vector.load %arg4[%c0_5, %c0_6, %c0_7] : memref<1x256x128xf32, #tpu.memory_space<vmem>>, vector<1x256x128xf32>
    %11 = vector.shape_cast %10 : vector<1x256x128xf32> to vector<256x128xf32>
    %cst = arith.constant dense<0.000000e+00> : vector<16x128xf32>
    %12 = tpu.matmul %9, %11, %cst {dimension_numbers = #tpu.dot_dimension_numbers<[1], [0], [0], [1], [0, 0, 1, 1], [], []>} : vector<16x256xf32>, vector<256x128xf32>, vector<16x128xf32> -> vector<16x128xf32>
    %13 = vector.broadcast %2 : vector<1x128xf32> to vector<16x128xf32>
    %14 = arith.addf %12, %13 : vector<16x128xf32>
    %cst_8 = arith.constant dense<0.000000e+00> : vector<16xf32>
    %15 = vector.multi_reduction <add>, %14, %cst_8 [1] : vector<16x128xf32> to vector<16xf32>
    %16 = vector.shape_cast %15 : vector<16xf32> to vector<16x1xf32>
    %cst_9 = arith.constant 1.280000e+02 : f32
    %17 = vector.broadcast %cst_9 : f32 to vector<16x1xf32>
    %18 = arith.divf %16, %17 : vector<16x1xf32>
    %19 = vector.broadcast %18 : vector<16x1xf32> to vector<16x128xf32>
    %20 = arith.subf %14, %19 : vector<16x128xf32>
    %21 = arith.mulf %20, %20 : vector<16x128xf32>
    %cst_10 = arith.constant dense<0.000000e+00> : vector<16xf32>
    %22 = vector.multi_reduction <add>, %21, %cst_10 [1] : vector<16x128xf32> to vector<16xf32>
    %23 = vector.shape_cast %22 : vector<16xf32> to vector<16x1xf32>
    %cst_11 = arith.constant 1.280000e+02 : f32
    %24 = vector.broadcast %cst_11 : f32 to vector<16x1xf32>
    %25 = arith.divf %23, %24 : vector<16x1xf32>
    %26 = vector.broadcast %18 : vector<16x1xf32> to vector<16x128xf32>
    %27 = arith.subf %14, %26 : vector<16x128xf32>
    %cst_12 = arith.constant 9.99999974E-6 : f32
    %28 = vector.broadcast %cst_12 : f32 to vector<16x1xf32>
    %29 = arith.addf %25, %28 : vector<16x1xf32>
    %30 = math.rsqrt %29 : vector<16x1xf32>
    %31 = vector.broadcast %30 : vector<16x1xf32> to vector<16x128xf32>
    %32 = arith.mulf %27, %31 : vector<16x128xf32>
    %33 = vector.broadcast %3 : vector<1x128xf32> to vector<16x128xf32>
    %34 = arith.mulf %32, %33 : vector<16x128xf32>
    %35 = vector.broadcast %4 : vector<1x128xf32> to vector<16x128xf32>
    %36 = arith.addf %34, %35 : vector<16x128xf32>
    %cst_13 = arith.constant 5.000000e-01 : f32
    %37 = vector.broadcast %cst_13 : f32 to vector<16x128xf32>
    %38 = arith.mulf %37, %36 : vector<16x128xf32>
    %cst_14 = arith.constant 0.707106769 : f32
    %39 = vector.broadcast %cst_14 : f32 to vector<16x128xf32>
    %40 = arith.mulf %36, %39 : vector<16x128xf32>
    %41 = math.erf %40 : vector<16x128xf32>
    %cst_15 = arith.constant 1.000000e+00 : f32
    %42 = vector.broadcast %cst_15 : f32 to vector<16x128xf32>
    %43 = arith.addf %42, %41 : vector<16x128xf32>
    %44 = arith.mulf %38, %43 : vector<16x128xf32>
    %c0_16 = arith.constant 0 : index
    %c0_17 = arith.constant 0 : index
    %c0_18 = arith.constant 0 : index
    %45 = vector.load %arg5[%c0_16, %c0_17, %c0_18] : memref<1x128x128xf32, #tpu.memory_space<vmem>>, vector<1x128x128xf32>
    %46 = vector.shape_cast %45 : vector<1x128x128xf32> to vector<128x128xf32>
    %cst_19 = arith.constant dense<0.000000e+00> : vector<16x128xf32>
    %47 = tpu.matmul %44, %46, %cst_19 {dimension_numbers = #tpu.dot_dimension_numbers<[1], [0], [0], [1], [0, 0, 1, 1], [], []>} : vector<16x128xf32>, vector<128x128xf32>, vector<16x128xf32> -> vector<16x128xf32>
    %48 = vector.broadcast %5 : vector<1x128xf32> to vector<16x128xf32>
    %49 = arith.addf %47, %48 : vector<16x128xf32>
    %cst_20 = arith.constant dense<0.000000e+00> : vector<16xf32>
    %50 = vector.multi_reduction <add>, %49, %cst_20 [1] : vector<16x128xf32> to vector<16xf32>
    %51 = vector.shape_cast %50 : vector<16xf32> to vector<16x1xf32>
    %cst_21 = arith.constant 1.280000e+02 : f32
    %52 = vector.broadcast %cst_21 : f32 to vector<16x1xf32>
    %53 = arith.divf %51, %52 : vector<16x1xf32>
    %54 = vector.broadcast %53 : vector<16x1xf32> to vector<16x128xf32>
    %55 = arith.subf %49, %54 : vector<16x128xf32>
    %56 = arith.mulf %55, %55 : vector<16x128xf32>
    %cst_22 = arith.constant dense<0.000000e+00> : vector<16xf32>
    %57 = vector.multi_reduction <add>, %56, %cst_22 [1] : vector<16x128xf32> to vector<16xf32>
    %58 = vector.shape_cast %57 : vector<16xf32> to vector<16x1xf32>
    %cst_23 = arith.constant 1.280000e+02 : f32
    %59 = vector.broadcast %cst_23 : f32 to vector<16x1xf32>
    %60 = arith.divf %58, %59 : vector<16x1xf32>
    %61 = vector.broadcast %53 : vector<16x1xf32> to vector<16x128xf32>
    %62 = arith.subf %49, %61 : vector<16x128xf32>
    %cst_24 = arith.constant 9.99999974E-6 : f32
    %63 = vector.broadcast %cst_24 : f32 to vector<16x1xf32>
    %64 = arith.addf %60, %63 : vector<16x1xf32>
    %65 = math.rsqrt %64 : vector<16x1xf32>
    %66 = vector.broadcast %65 : vector<16x1xf32> to vector<16x128xf32>
    %67 = arith.mulf %62, %66 : vector<16x128xf32>
    %68 = vector.broadcast %6 : vector<1x128xf32> to vector<16x128xf32>
    %69 = arith.mulf %67, %68 : vector<16x128xf32>
    %70 = vector.broadcast %7 : vector<1x128xf32> to vector<16x128xf32>
    %71 = arith.addf %69, %70 : vector<16x128xf32>
    %cst_25 = arith.constant 5.000000e-01 : f32
    %72 = vector.broadcast %cst_25 : f32 to vector<16x128xf32>
    %73 = arith.mulf %72, %71 : vector<16x128xf32>
    %cst_26 = arith.constant 0.707106769 : f32
    %74 = vector.broadcast %cst_26 : f32 to vector<16x128xf32>
    %75 = arith.mulf %71, %74 : vector<16x128xf32>
    %76 = math.erf %75 : vector<16x128xf32>
    %cst_27 = arith.constant 1.000000e+00 : f32
    %77 = vector.broadcast %cst_27 : f32 to vector<16x128xf32>
    %78 = arith.addf %77, %76 : vector<16x128xf32>
    %79 = arith.mulf %73, %78 : vector<16x128xf32>
    %80 = arith.addf %79, %44 : vector<16x128xf32>
    %c0_28 = arith.constant 0 : index
    %c0_29 = arith.constant 0 : index
    %c0_30 = arith.constant 0 : index
    %81 = vector.load %arg6[%c0_28, %c0_29, %c0_30] : memref<1x128x128xf32, #tpu.memory_space<vmem>>, vector<1x128x128xf32>
    %82 = vector.shape_cast %81 : vector<1x128x128xf32> to vector<128x128xf32>
    %cst_31 = arith.constant dense<0.000000e+00> : vector<16x128xf32>
    %83 = tpu.matmul %80, %82, %cst_31 {dimension_numbers = #tpu.dot_dimension_numbers<[1], [0], [0], [1], [0, 0, 1, 1], [], []>} : vector<16x128xf32>, vector<128x128xf32>, vector<16x128xf32> -> vector<16x128xf32>
    %c0_32 = arith.constant 0 : index
    %c0_33 = arith.constant 0 : index
    %c0_34 = arith.constant 0 : index
    %84 = vector.load %arg8[%c0_32, %c0_33, %c0_34] : memref<1x1x128xf32, #tpu.memory_space<vmem>>, vector<1x1x128xf32>
    %85 = vector.shape_cast %84 : vector<1x1x128xf32> to vector<1x128xf32>
    %86 = vector.broadcast %85 : vector<1x128xf32> to vector<16x128xf32>
    %87 = arith.addf %83, %86 : vector<16x128xf32>
    %c0_35 = arith.constant 0 : index
    %c0_36 = arith.constant 0 : index
    %c0_37 = arith.constant 0 : index
    %88 = vector.load %arg9[%c0_35, %c0_36, %c0_37] : memref<1x16x128xf32, #tpu.memory_space<vmem>>, vector<1x16x128xf32>
    %89 = vector.shape_cast %88 : vector<1x16x128xf32> to vector<16x128xf32>
    %90 = vector.shape_cast %87 : vector<16x128xf32> to vector<1x16x128xf32>
    tpu.vector_store %arg9[%c0_35, %c0_36, %c0_37], %90 {strides = array<i32>} : memref<1x16x128xf32, #tpu.memory_space<vmem>>, vector<1x16x128xf32>,
    return
  }
  func.func @transform_0(%arg0: i32, %arg1: i32, %arg2: memref<4xi32, #tpu.memory_space<smem>>) -> (i32, i32, i32) {
    %0 = arith.index_cast %arg0 : i32 to index
    %1 = memref.load %arg2[%0] : memref<4xi32, #tpu.memory_space<smem>>
    %c0_i32 = arith.constant 0 : i32
    %c0_i32_0 = arith.constant 0 : i32
    return %1, %arg1, %c0_i32 : i32, i32, i32
  }
  func.func @transform_1(%arg0: i32, %arg1: i32, %arg2: memref<4xi32, #tpu.memory_space<smem>>) -> (i32, i32, i32) {
    %c0_i32 = arith.constant 0 : i32
    %c0_i32_0 = arith.constant 0 : i32
    %c0_i32_1 = arith.constant 0 : i32
    return %arg0, %c0_i32, %c0_i32_0 : i32, i32, i32
  }
  func.func @transform_2(%arg0: i32, %arg1: i32, %arg2: memref<4xi32, #tpu.memory_space<smem>>) -> (i32, i32, i32) {
    %c0_i32 = arith.constant 0 : i32
    %c0_i32_0 = arith.constant 0 : i32
    %c0_i32_1 = arith.constant 0 : i32
    return %arg0, %c0_i32, %c0_i32_0 : i32, i32, i32
  }
  func.func @transform_3(%arg0: i32, %arg1: i32, %arg2: memref<4xi32, #tpu.memory_space<smem>>) -> (i32, i32, i32) {
    %c0_i32 = arith.constant 0 : i32
    %c0_i32_0 = arith.constant 0 : i32
    %c0_i32_1 = arith.constant 0 : i32
    return %arg0, %c0_i32, %c0_i32_0 : i32, i32, i32
  }
  func.func @transform_4(%arg0: i32, %arg1: i32, %arg2: memref<4xi32, #tpu.memory_space<smem>>) -> (i32, i32, i32) {
    %c0_i32 = arith.constant 0 : i32
    %c0_i32_0 = arith.constant 0 : i32
    %c0_i32_1 = arith.constant 0 : i32
    return %arg0, %c0_i32, %c0_i32_0 : i32, i32, i32
  }
  func.func @transform_5(%arg0: i32, %arg1: i32, %arg2: memref<4xi32, #tpu.memory_space<smem>>) -> (i32, i32, i32) {
    %c0_i32 = arith.constant 0 : i32
    %c0_i32_0 = arith.constant 0 : i32
    %c0_i32_1 = arith.constant 0 : i32
    return %arg0, %c0_i32, %c0_i32_0 : i32, i32, i32
  }
  func.func @transform_6(%arg0: i32, %arg1: i32, %arg2: memref<4xi32, #tpu.memory_space<smem>>) -> (i32, i32, i32) {
    %c0_i32 = arith.constant 0 : i32
    %c0_i32_0 = arith.constant 0 : i32
    return %arg0, %arg1, %c0_i32 : i32, i32, i32
  }
}

</mosaic_0001>

<llo_original>
// kernel: tpu_custom_call.1
$region0: #{tpu_custom_call.1}
  #allocation0 [shape = 'u32[]', space=smem, size = 0x4, offset = 0x4, fixed_abs, tag = 'smem constant byte address 0x4 - core index']
  #allocation1 [shape = 'u32[144,128]{1,0:T(1,128)}', space=vmem, size = 0x12000, scoped, tag = 'internal scratch']
  #allocation2 [shape = 's32[1]{0}', space=sflag, size = 0x4, scoped, tag = 'scoped memory for tpu_custom_call.1']
  #allocation3 [shape = 'u8[512]{0}', space=smem, size = 0x200, scoped, tag = 'prefetched SMEM operand 0']
  %s0 = inlined_call_operand.vmem [shape: s32[4], index: 0, kind: input, shape index: {}]
  %s1 = inlined_call_operand.hbm [shape: f32[2,16,256], index: 1, kind: input, shape index: {}]
  %s2 = inlined_call_operand.hbm [shape: f32[4,256,128], index: 2, kind: input, shape index: {}]
  %s3 = inlined_call_operand.hbm [shape: f32[4,128,128], index: 3, kind: input, shape index: {}]
  %s4 = inlined_call_operand.hbm [shape: f32[4,128,128], index: 4, kind: input, shape index: {}]
  %s5 = inlined_call_operand.vmem [shape: f32[4,6,128], index: 5, kind: input, shape index: {}]
  %s6 = inlined_call_operand.vmem [shape: f32[4,1,128], index: 6, kind: input, shape index: {}]
  %s7 = inlined_call_operand.hbm [shape: f32[4,16,128], index: 7, kind: output, shape index: {}]
  %s8 = sld [smem:[#allocation0]]
  $region73: #{tpu_custom_call.1} parent=0
    _
  %s10 = ssub.s32 1, %s8
  %s11 = scalar_select 0, %s10, %s8
  %s12 = sshll.u32 %s0, 4
  %s13 = int_to_ptr.vmem [resolvable:$true] %s12
  %15 = dma.vmem_to_smem %s13, 16, [#allocation3], [#allocation2]
  %16 = dma.done [#allocation2], 16
  %17 = sfence
  $region1: #{tpu_custom_call.1} parent=0
    #allocation4 [shape = 'u8[32768]{0}', space=vmem, size = 0x8000, scoped, tag = 'input window, operand 1']
    #allocation5 [shape = 's32[2]{0}', space=sflag, size = 0x8, scoped, tag = 'scoped memory for tpu_custom_call.1']
    #allocation6 [shape = 's32[2]{0}', space=sflag, size = 0x8, scoped, tag = 'scoped memory for tpu_custom_call.1']
    #allocation7 [shape = 'u8[131072]{0}', space=vmem, size = 0x20000, scoped, tag = 'input window, operand 2, single buffered']
    #allocation8 [shape = 's32[1]{0}', space=sflag, size = 0x4, scoped, tag = 'scoped memory for tpu_custom_call.1']
    #allocation9 [shape = 'u8[65536]{0}', space=vmem, size = 0x10000, scoped, tag = 'input window, operand 3, single buffered']
    #allocation10 [shape = 'u8[65536]{0}', space=vmem, size = 0x10000, scoped, tag = 'input window, operand 4, single buffered']
    #allocation11 [shape = 's32[1]{0}', space=sflag, size = 0x4, scoped, tag = 'scoped memory for tpu_custom_call.1']
    #allocation12 [shape = 'u8[16384]{0}', space=vmem, size = 0x4000, scoped, tag = 'output window, operand 0']
    %18 = vsyncpa [#allocation5], 0
    %s19 = scalar_lea.sflag [#allocation5], 1
    %20 = vsyncpa %s19, 0
    %21 = vsyncpa [#allocation8], 0
    %22 = vsyncpa [#allocation11], 0
    %23 = vsyncpa [#allocation6], 0
    %s24 = scalar_lea.sflag [#allocation6], 1
    %25 = vsyncpa %s24, 0
    loop: start=0, step=1, limit=6
    $region2: #{tpu_custom_call.1} parent=1 // loop_pre_header
      _
    $region3: #{tpu_custom_call.1} parent=1 // loop_header
      %s27 = sphi 0, %s31
      %p28 = scmp.ge.s32.totalorder %s27, 6
      %s34 = sphi 0, %s46
      %s35 = sphi 0, %s42
      %s36 = sphi 0, %s34
      %s37 = sphi 0, %s35
      %s38 = sphi 0, %s36
      %s39 = sphi 0, %s37
      %s53 = sphi 0, %s55
      %s56 = sphi 0, %s53
      %s57 = sphi 0, %s56
      %s73 = sphi 0, %s57
      %s79 = sphi 0, %s81
      %s82 = sphi 0, %s79
      %s83 = sphi 0, %s82
      %s99 = sphi 0, %s83
      %s105 = sphi 0, %s107
      %s108 = sphi 0, %s105
      %s109 = sphi 0, %s108
      %s125 = sphi 0, %s109
      %s131 = sphi 0, %s133
      %s134 = sphi 0, %s131
      %s135 = sphi 0, %s134
      %s151 = sphi 0, %s135
      %s157 = sphi 0, %s159
      %s160 = sphi 0, %s157
      %s161 = sphi 0, %s160
      %s177 = sphi 0, %s161
      %s183 = sphi 0, %s185
      %s186 = sphi 0, %s183
      %s187 = sphi 0, %s186
      %s203 = sphi 0, %s187
      %s211 = sphi 0, %s213
      %s214 = sphi 0, %s211
      %s215 = sphi 0, %s214
      %s231 = sphi 0, %s215
    $region4: #{tpu_custom_call.1} parent=1 // loop_header_branch
      %30 = sbr.rel (%p28) target = $region8
    $region5: #{tpu_custom_call.1} parent=1 // loop_body
      %s32 = ssub.s32 %s27, 1
      %s33 = ssub.s32 %s27, 2
      %s40 = sadd.s32 1, %s35
      %p41 = scmp.ge.s32.totalorder %s40, 1
      %s42 = scalar_select %p41, 0, %s40
      %s43 = sadd.s32 1, %s34
      %s44 = scalar_select %p41, %s43, %s34
      %p45 = scmp.ge.s32.totalorder %s44, 4
      %s46 = scalar_select %p45, 0, %s44
      %s47 = sld [smem:[#allocation3 + %s34]]
      %s48 = sld [smem:[#allocation3 + %s46]]
      %s49 = ssub.s32 %s47, %s48
      %s50 = ssub.s32 %s35, %s42
      %s51 = sor.u32 %s49, %s50
      %p52 = scmp.eq.s32.totalorder %s51, 0
      %s54 = sadd.s32 %s53, 1
      %s55 = scalar_select %p52, %s53, %s54
      %p58 = pneg %p52
      %p59 = scmp.eq.s32.totalorder %s27, 3
      %p60 = por %p58, %p59
      %p61 = scmp.ne.s32.totalorder %s53, %s56
      %p62 = scmp.eq.s32.totalorder %s27, 0
      %p63 = por %p61, %p62
      %p64 = scmp.ne.s32.totalorder %s53, %s56
      %p65 = scmp.eq.s32.totalorder %s32, 3
      %p66 = por %p64, %p65
      %p67 = scmp.ne.s32.totalorder %s56, %s57
      %p68 = scmp.eq.s32.totalorder %s32, 0
      %p69 = por %p67, %p68
      %p70 = scmp.ne.s32.totalorder %s56, %s57
      %p71 = scmp.eq.s32.totalorder %s33, 3
      %p72 = por %p70, %p71
      %p74 = scmp.ne.s32.totalorder %s57, %s73
      %p75 = scmp.eq.s32.totalorder %s33, 0
      %p76 = por %p74, %p75
      %s77 = ssub.s32 %s34, %s46
      %p78 = scmp.eq.s32.totalorder %s77, 0
      %s80 = sadd.s32 %s79, 1
      %s81 = scalar_select %p78, %s79, %s80
      %p84 = pneg %p78
      %p85 = scmp.eq.s32.totalorder %s27, 3
      %p86 = por %p84, %p85
      %p87 = scmp.ne.s32.totalorder %s79, %s82
      %p88 = scmp.eq.s32.totalorder %s27, 0
      %p89 = por %p87, %p88
      %p90 = scmp.ne.s32.totalorder %s79, %s82
      %p91 = scmp.eq.s32.totalorder %s32, 3
      %p92 = por %p90, %p91
      %p93 = scmp.ne.s32.totalorder %s82, %s83
      %p94 = scmp.eq.s32.totalorder %s32, 0
      %p95 = por %p93, %p94
      %p96 = scmp.ne.s32.totalorder %s82, %s83
      %p97 = scmp.eq.s32.totalorder %s33, 3
      %p98 = por %p96, %p97
      %p100 = scmp.ne.s32.totalorder %s83, %s99
      %p101 = scmp.eq.s32.totalorder %s33, 0
      %p102 = por %p100, %p101
      %s103 = ssub.s32 %s34, %s46
      %p104 = scmp.eq.s32.totalorder %s103, 0
      %s106 = sadd.s32 %s105, 1
      %s107 = scalar_select %p104, %s105, %s106
      %p110 = pneg %p104
      %p111 = scmp.eq.s32.totalorder %s27, 3
      %p112 = por %p110, %p111
      %p113 = scmp.ne.s32.totalorder %s105, %s108
      %p114 = scmp.eq.s32.totalorder %s27, 0
      %p115 = por %p113, %p114
      %p116 = scmp.ne.s32.totalorder %s105, %s108
      %p117 = scmp.eq.s32.totalorder %s32, 3
      %p118 = por %p116, %p117
      %p119 = scmp.ne.s32.totalorder %s108, %s109
      %p120 = scmp.eq.s32.totalorder %s32, 0
      %p121 = por %p119, %p120
      %p122 = scmp.ne.s32.totalorder %s108, %s109
      %p123 = scmp.eq.s32.totalorder %s33, 3
      %p124 = por %p122, %p123
      %p126 = scmp.ne.s32.totalorder %s109, %s125
      %p127 = scmp.eq.s32.totalorder %s33, 0
      %p128 = por %p126, %p127
      %s129 = ssub.s32 %s34, %s46
      %p130 = scmp.eq.s32.totalorder %s129, 0
      %s132 = sadd.s32 %s131, 1
      %s133 = scalar_select %p130, %s131, %s132
      %p136 = pneg %p130
      %p137 = scmp.eq.s32.totalorder %s27, 3
      %p138 = por %p136, %p137
      %p139 = scmp.ne.s32.totalorder %s131, %s134
      %p140 = scmp.eq.s32.totalorder %s27, 0
      %p141 = por %p139, %p140
      %p142 = scmp.ne.s32.totalorder %s131, %s134
      %p143 = scmp.eq.s32.totalorder %s32, 3
      %p144 = por %p142, %p143
      %p145 = scmp.ne.s32.totalorder %s134, %s135
      %p146 = scmp.eq.s32.totalorder %s32, 0
      %p147 = por %p145, %p146
      %p148 = scmp.ne.s32.totalorder %s134, %s135
      %p149 = scmp.eq.s32.totalorder %s33, 3
      %p150 = por %p148, %p149
      %p152 = scmp.ne.s32.totalorder %s135, %s151
      %p153 = scmp.eq.s32.totalorder %s33, 0
      %p154 = por %p152, %p153
      %s155 = ssub.s32 %s34, %s46
      %p156 = scmp.eq.s32.totalorder %s155, 0
      %s158 = sadd.s32 %s157, 1
      %s159 = scalar_select %p156, %s157, %s158
      %p162 = pneg %p156
      %p163 = scmp.eq.s32.totalorder %s27, 3
      %p164 = por %p162, %p163
      %p165 = scmp.ne.s32.totalorder %s157, %s160
      %p166 = scmp.eq.s32.totalorder %s27, 0
      %p167 = por %p165, %p166
      %p168 = scmp.ne.s32.totalorder %s157, %s160
      %p169 = scmp.eq.s32.totalorder %s32, 3
      %p170 = por %p168, %p169
      %p171 = scmp.ne.s32.totalorder %s160, %s161
      %p172 = scmp.eq.s32.totalorder %s32, 0
      %p173 = por %p171, %p172
      %p174 = scmp.ne.s32.totalorder %s160, %s161
      %p175 = scmp.eq.s32.totalorder %s33, 3
      %p176 = por %p174, %p175
      %p178 = scmp.ne.s32.totalorder %s161, %s177
      %p179 = scmp.eq.s32.totalorder %s33, 0
      %p180 = por %p178, %p179
      %s181 = ssub.s32 %s34, %s46
      %p182 = scmp.eq.s32.totalorder %s181, 0
      %s184 = sadd.s32 %s183, 1
      %s185 = scalar_select %p182, %s183, %s184
      %p188 = pneg %p182
      %p189 = scmp.eq.s32.totalorder %s27, 3
      %p190 = por %p188, %p189
      %p191 = scmp.ne.s32.totalorder %s183, %s186
      %p192 = scmp.eq.s32.totalorder %s27, 0
      %p193 = por %p191, %p192
      %p194 = scmp.ne.s32.totalorder %s183, %s186
      %p195 = scmp.eq.s32.totalorder %s32, 3
      %p196 = por %p194, %p195
      %p197 = scmp.ne.s32.totalorder %s186, %s187
      %p198 = scmp.eq.s32.totalorder %s32, 0
      %p199 = por %p197, %p198
      %p200 = scmp.ne.s32.totalorder %s186, %s187
      %p201 = scmp.eq.s32.totalorder %s33, 3
      %p202 = por %p200, %p201
      %p204 = scmp.ne.s32.totalorder %s187, %s203
      %p205 = scmp.eq.s32.totalorder %s33, 0
      %p206 = por %p204, %p205
      %s207 = ssub.s32 %s34, %s46
      %s208 = ssub.s32 %s35, %s42
      %s209 = sor.u32 %s207, %s208
      %p210 = scmp.eq.s32.totalorder %s209, 0
      %s212 = sadd.s32 %s211, 1
      %s213 = scalar_select %p210, %s211, %s212
      %p216 = pneg %p210
      %p217 = scmp.eq.s32.totalorder %s27, 3
      %p218 = por %p216, %p217
      %p219 = scmp.ne.s32.totalorder %s211, %s214
      %p220 = scmp.eq.s32.totalorder %s27, 0
      %p221 = por %p219, %p220
      %p222 = scmp.ne.s32.totalorder %s211, %s214
      %p223 = scmp.eq.s32.totalorder %s32, 3
      %p224 = por %p222, %p223
      %p225 = scmp.ne.s32.totalorder %s214, %s215
      %p226 = scmp.eq.s32.totalorder %s32, 0
      %p227 = por %p225, %p226
      %p228 = scmp.ne.s32.totalorder %s214, %s215
      %p229 = scmp.eq.s32.totalorder %s33, 3
      %p230 = por %p228, %p229
      %p232 = scmp.ne.s32.totalorder %s215, %s231
      %p233 = scmp.eq.s32.totalorder %s33, 0
      %p234 = por %p232, %p233
      %p235 = scmp.le.s32.totalorder 1, %s27
      %p236 = scmp.lt.s32.totalorder %s27, 5
      %p237 = pnand %p235, %p236
      %p238 = pneg %p237
      // Predicated region
      $region9: #{tpu_custom_call.1} parent=5 // pred_check
        _
      $region10: #{tpu_custom_call.1} parent=5 // pred_check_branch
        %240 = sbr.rel (%p237) target = $region12
      $region11: #{tpu_custom_call.1} parent=5 // pred_region
        %s241 = ssub.s32 %s27, 1
        // Predicated region
        $region13: #{tpu_custom_call.1} parent=11 // pred_check
          %p242 = pneg %p95
        $region14: #{tpu_custom_call.1} parent=11 // pred_check_branch
          %244 = sbr.rel (%p242) target = $region16
        $region15: #{tpu_custom_call.1} parent=11 // pred_region
          %s246 = ssub.s32 4096, 4096
          %247 = vsyncadd [#allocation8], %s246
          %s248 = smul.addr %s36, 32
          %s249 = smul.addr %s248, 128
          %s250 = scalar_lea.hbm %s2, %s249
          %s251 = sshll.u32 [#allocation7], 4
          %s252 = int_to_ptr.vmem [resolvable:$true] %s251
          %257 = dma.hbm_to_vmem [thread:$0]  %s250, 4096, %s252, [#allocation8], 128, 128, 8
        $region16: #{tpu_custom_call.1} parent=11 // pred_fallthru
          _
        // Predicated region
        $region17: #{tpu_custom_call.1} parent=11 // pred_check
          %p258 = pneg %p121
        $region18: #{tpu_custom_call.1} parent=11 // pred_check_branch
          %260 = sbr.rel (%p258) target = $region20
        $region19: #{tpu_custom_call.1} parent=11 // pred_region
          %s262 = ssub.s32 2048, 2048
          %263 = vsyncadd [#allocation8], %s262
          %s264 = smul.addr %s36, 16
          %s265 = smul.addr %s264, 128
          %s266 = scalar_lea.hbm %s3, %s265
          %s267 = sshll.u32 [#allocation9], 4
          %s268 = int_to_ptr.vmem [resolvable:$true] %s267
          %273 = dma.hbm_to_vmem [thread:$0]  %s266, 2048, %s268, [#allocation8], 128, 128, 8
        $region20: #{tpu_custom_call.1} parent=11 // pred_fallthru
          _
        // Predicated region
        $region21: #{tpu_custom_call.1} parent=11 // pred_check
          %p274 = pneg %p147
        $region22: #{tpu_custom_call.1} parent=11 // pred_check_branch
          %276 = sbr.rel (%p274) target = $region24
        $region23: #{tpu_custom_call.1} parent=11 // pred_region
          %s278 = ssub.s32 2048, 2048
          %279 = vsyncadd [#allocation11], %s278
          %s280 = smul.addr %s36, 16
          %s281 = smul.addr %s280, 128
          %s282 = scalar_lea.hbm %s4, %s281
          %s283 = sshll.u32 [#allocation10], 4
          %s284 = int_to_ptr.vmem [resolvable:$true] %s283
          %289 = dma.hbm_to_vmem [thread:$0]  %s282, 2048, %s284, [#allocation11], 128, 128, 8
        $region24: #{tpu_custom_call.1} parent=11 // pred_fallthru
          _
      $region12: #{tpu_custom_call.1} parent=5 // pred_fallthru
        _
      %p290 = scmp.lt.s32.totalorder %s27, 4
      // Predicated region
      $region25: #{tpu_custom_call.1} parent=5 // pred_check
        %p291 = pneg %p290
      $region26: #{tpu_custom_call.1} parent=5 // pred_check_branch
        %293 = sbr.rel (%p291) target = $region28
      $region27: #{tpu_custom_call.1} parent=5 // pred_region
        // Predicated region
        $region29: #{tpu_custom_call.1} parent=27 // pred_check
          %p294 = pneg %p63
        $region30: #{tpu_custom_call.1} parent=27 // pred_check_branch
          %296 = sbr.rel (%p294) target = $region32
        $region31: #{tpu_custom_call.1} parent=27 // pred_region
          %s297 = sand.u32 %s53, 1
          %s298 = scalar_lea.sflag [#allocation5], %s297
          %s299 = sand.u32 %s53, 1
          %s300 = smul.addr %s299, 32
          %s301 = scalar_lea.vmem [#allocation4], %s300
          %s302 = sld [smem:[#allocation3 + %s34]]
          %s303 = smul.u32 2, %s35
          %s305 = ssub.s32 512, 512
          %306 = vsyncadd %s298, %s305
          %s307 = smul.addr %s303, 2
          %s308 = smul.addr %s302, 4
          %s309 = sadd.s32 %s307, %s308
          %s310 = smul.addr %s309, 128
          %s311 = scalar_lea.hbm %s1, %s310
          %s312 = sshll.u32 %s301, 4
          %s313 = int_to_ptr.vmem [resolvable:$true] %s312
          %318 = dma.hbm_to_vmem [thread:$0]  %s311, 512, %s313, %s298, 256, 256, 16
        $region32: #{tpu_custom_call.1} parent=27 // pred_fallthru
          _
        // Predicated region
        $region33: #{tpu_custom_call.1} parent=27 // pred_check
          %p319 = pneg %p167
        $region34: #{tpu_custom_call.1} parent=27 // pred_check_branch
          %321 = sbr.rel (%p319) target = $region36
        $region35: #{tpu_custom_call.1} parent=27 // pred_region
          %p322 = scmp.lt.s32.totalorder %s34, 3
          %s323 = scalar_select %p322, %s34, 3
          %s324 = smul.addr %s323, 8
          %s325 = scalar_lea.vmem %s5, %s324
        $region36: #{tpu_custom_call.1} parent=27 // pred_fallthru
          _
        // Predicated region
        $region37: #{tpu_custom_call.1} parent=27 // pred_check
          %p326 = pneg %p193
        $region38: #{tpu_custom_call.1} parent=27 // pred_check_branch
          %328 = sbr.rel (%p326) target = $region40
        $region39: #{tpu_custom_call.1} parent=27 // pred_region
          %p329 = scmp.lt.s32.totalorder %s34, 3
          %s330 = scalar_select %p329, %s34, 3
          %s331 = scalar_lea.vmem %s6, %s330
        $region40: #{tpu_custom_call.1} parent=27 // pred_fallthru
          _
      $region28: #{tpu_custom_call.1} parent=5 // pred_fallthru
        _
      %p332 = scmp.le.s32.totalorder 1, %s27
      %p333 = scmp.lt.s32.totalorder %s27, 5
      %p334 = pnand %p332, %p333
      %p335 = pneg %p334
      // Predicated region
      $region41: #{tpu_custom_call.1} parent=5 // pred_check
        _
      $region42: #{tpu_custom_call.1} parent=5 // pred_check_branch
        %337 = sbr.rel (%p334) target = $region44
      $region43: #{tpu_custom_call.1} parent=5 // pred_region
        %s338 = ssub.s32 %s27, 1
        %s339 = sand.u32 %s56, 1
        %s340 = scalar_lea.sflag [#allocation5], %s339
        %s341 = sand.u32 %s56, 1
        %s342 = smul.addr %s341, 32
        %s343 = scalar_lea.vmem [#allocation4], %s342
        // Predicated region
        $region45: #{tpu_custom_call.1} parent=43 // pred_check
          %p344 = pneg %p69
        $region46: #{tpu_custom_call.1} parent=43 // pred_check_branch
          %346 = sbr.rel (%p344) target = $region48
        $region47: #{tpu_custom_call.1} parent=43 // pred_region
          %347 = dma.done %s340, 512
        $region48: #{tpu_custom_call.1} parent=43 // pred_fallthru
          _
        // Predicated region
        $region49: #{tpu_custom_call.1} parent=43 // pred_check
          %p348 = pneg %p95
        $region50: #{tpu_custom_call.1} parent=43 // pred_check_branch
          %350 = sbr.rel (%p348) target = $region52
        $region51: #{tpu_custom_call.1} parent=43 // pred_region
          %351 = dma.done [#allocation8], 4096
        $region52: #{tpu_custom_call.1} parent=43 // pred_fallthru
          _
        // Predicated region
        $region53: #{tpu_custom_call.1} parent=43 // pred_check
          %p352 = pneg %p121
        $region54: #{tpu_custom_call.1} parent=43 // pred_check_branch
          %354 = sbr.rel (%p352) target = $region56
        $region55: #{tpu_custom_call.1} parent=43 // pred_region
          %355 = dma.done [#allocation8], 2048
        $region56: #{tpu_custom_call.1} parent=43 // pred_fallthru
          _
        // Predicated region
        $region57: #{tpu_custom_call.1} parent=43 // pred_check
          %p356 = pneg %p147
        $region58: #{tpu_custom_call.1} parent=43 // pred_check_branch
          %358 = sbr.rel (%p356) target = $region60
        $region59: #{tpu_custom_call.1} parent=43 // pred_region
          %359 = dma.done [#allocation11], 2048
        $region60: #{tpu_custom_call.1} parent=43 // pred_fallthru
          _
        %s360 = sand.u32 %s56, 1
        %s361 = scalar_lea.sflag [#allocation5], %s360
        %s362 = sand.u32 %s56, 1
        %s363 = smul.addr %s362, 32
        %s364 = scalar_lea.vmem [#allocation4], %s363
        %p365 = pneg %p69
        %p366 = pneg %p66
        %p367 = pneg %p95
        %p368 = pneg %p92
        %p369 = pneg %p121
        %p370 = pneg %p118
        %p371 = pneg %p147
        %p372 = pneg %p144
        %p373 = scmp.lt.s32.totalorder %s36, 3
        %s374 = scalar_select %p373, %s36, 3
        %s375 = smul.addr %s374, 8
        %s376 = scalar_lea.vmem %s5, %s375
        %p377 = pneg %p173
        %p378 = pneg %p170
        %p379 = scmp.lt.s32.totalorder %s36, 3
        %s380 = scalar_select %p379, %s36, 3
        %s381 = scalar_lea.vmem %s6, %s380
        %p382 = pneg %p199
        %p383 = pneg %p196
        %p384 = pneg %p227
        %p385 = pneg %p224
        %s386 = sand.u32 %s214, 1
        %s387 = scalar_lea.sflag [#allocation6], %s386
        %s388 = sand.u32 %s214, 1
        %s389 = smul.addr %s388, 16
        %s390 = scalar_lea.vmem [#allocation12], %s389
        %s391 = sld [smem:[#allocation3 + %s36]]
        %s392 = smul.u32 2, %s37
        %p393 = scmp.lt.s32.totalorder %s36, 3
        %s394 = scalar_select %p393, %s36, 3
        %s395 = smul.addr %s394, 8
        %s396 = scalar_lea.vmem %s5, %s395
        %p397 = scmp.lt.s32.totalorder %s36, 3
        %s398 = scalar_select %p397, %s36, 3
        %s399 = scalar_lea.vmem %s6, %s398
        %s400 = smul.u32 2, %s37
        %v401 = vld [vmem:[%s396] sm:$0x3f]
        %v402 = vld [vmem:[%s343] sm:$0xff]
        %v403 = vld [vmem:[%s343 + $0x8] sm:$0xff]
        %v404 = vld [vmem:[%s343 + $0x10] sm:$0xff]
        %v405 = vld [vmem:[%s343 + $0x18] sm:$0xff]
        %v406 = vld [vmem:[#allocation7] sm:$0xff]
        %v407 = vld [vmem:[#allocation7 + $0x8] sm:$0xff]
        %v408 = vld [vmem:[#allocation7 + $0x10] sm:$0xff]
        %v409 = vld [vmem:[#allocation7 + $0x18] sm:$0xff]
        %v410 = vld [vmem:[#allocation7 + $0x20] sm:$0xff]
        %v411 = vld [vmem:[#allocation7 + $0x28] sm:$0xff]
        %v412 = vld [vmem:[#allocation7 + $0x30] sm:$0xff]
        %v413 = vld [vmem:[#allocation7 + $0x38] sm:$0xff]
        %v414 = vld [vmem:[#allocation7 + $0x40] sm:$0xff]
        %v415 = vld [vmem:[#allocation7 + $0x48] sm:$0xff]
        %v416 = vld [vmem:[#allocation7 + $0x50] sm:$0xff]
        %v417 = vld [vmem:[#allocation7 + $0x58] sm:$0xff]
        %v418 = vld [vmem:[#allocation7 + $0x60] sm:$0xff]
        %v419 = vld [vmem:[#allocation7 + $0x68] sm:$0xff]
        %v420 = vld [vmem:[#allocation7 + $0x70] sm:$0xff]
        %v421 = vld [vmem:[#allocation7 + $0x78] sm:$0xff]
        %v422 = vld [vmem:[#allocation7 + $0x80] sm:$0xff]
        %v423 = vld [vmem:[#allocation7 + $0x88] sm:$0xff]
        %v424 = vld [vmem:[#allocation7 + $0x90] sm:$0xff]
        %v425 = vld [vmem:[#allocation7 + $0x98] sm:$0xff]
        %v426 = vld [vmem:[#allocation7 + $0xa0] sm:$0xff]
        %v427 = vld [vmem:[#allocation7 + $0xa8] sm:$0xff]
        %v428 = vld [vmem:[#allocation7 + $0xb0] sm:$0xff]
        %v429 = vld [vmem:[#allocation7 + $0xb8] sm:$0xff]
        %v430 = vld [vmem:[#allocation7 + $0xc0] sm:$0xff]
        %v431 = vld [vmem:[#allocation7 + $0xc8] sm:$0xff]
        %v432 = vld [vmem:[#allocation7 + $0xd0] sm:$0xff]
        %v433 = vld [vmem:[#allocation7 + $0xd8] sm:$0xff]
        %v434 = vld [vmem:[#allocation7 + $0xe0] sm:$0xff]
        %v435 = vld [vmem:[#allocation7 + $0xe8] sm:$0xff]
        %v436 = vld [vmem:[#allocation7 + $0xf0] sm:$0xff]
        %v437 = vld [vmem:[#allocation7 + $0xf8] sm:$0xff]
        %v438 = vlaneseq
        %v439 = vshrl.u32 %v438, 7
        %v440 = vsub.s32 0, %v439
        %v441 = vrot.slane %v401, %v440
        %442 = vmatprep.subr.mxu0 0.0
        %443 = vmatpush1.msra.mxu0 %v406
        %444 = vmatprep.subr.mxu0 0.0
        %445 = vmatpush1.msra.mxu0 %v407
        %446 = vmatprep.subr.mxu0 0.0
        %447 = vmatpush1.msra.mxu0 %v408
        %448 = vmatprep.subr.mxu0 0.0
        %449 = vmatpush1.msra.mxu0 %v409
        %450 = vmatprep.subr.mxu0 0.0
        %451 = vmatpush1.msra.mxu0 %v410
        %452 = vmatprep.subr.mxu0 0.0
        %453 = vmatpush1.msra.mxu0 %v411
        %454 = vmatprep.subr.mxu0 0.0
        %455 = vmatpush1.msra.mxu0 %v412
        %456 = vmatprep.subr.mxu0 0.0
        %457 = vmatpush1.msra.mxu0 %v413
        %458 = vmatprep.subr.mxu0 0.0
        %459 = vmatpush1.msra.mxu0 %v414
        %460 = vmatprep.subr.mxu0 0.0
        %461 = vmatpush1.msra.mxu0 %v415
        %462 = vmatprep.subr.mxu0 0.0
        %463 = vmatpush1.msra.mxu0 %v416
        %464 = vmatprep.subr.mxu0 0.0
        %465 = vmatpush1.msra.mxu0 %v417
        %466 = vmatprep.subr.mxu0 0.0
        %467 = vmatpush1.msra.mxu0 %v418
        %468 = vmatprep.subr.mxu0 0.0
        %469 = vmatpush1.msra.mxu0 %v419
        %470 = vmatprep.subr.mxu0 0.0
        %471 = vmatpush1.msra.mxu0 %v420
        %472 = vmatprep.subr.mxu0 0.0
        %473 = vmatpush1.msra.mxu0 %v421
        %474 = vmatprep.subr.mxu0 0.0
        %475 = vmatpush1.msra.mxu0 %v422
        %476 = vmatprep.subr.mxu0 0.0
        %477 = vmatpush1.msra.mxu0 %v423
        %478 = vmatprep.subr.mxu0 0.0
        %479 = vmatpush1.msra.mxu0 %v424
        %480 = vmatprep.subr.mxu0 0.0
        %481 = vmatpush1.msra.mxu0 %v425
        %482 = vmatprep.subr.mxu0 0.0
        %483 = vmatpush1.msra.mxu0 %v426
        %484 = vmatprep.subr.mxu0 0.0
        %485 = vmatpush1.msra.mxu0 %v427
        %486 = vmatprep.subr.mxu0 0.0
        %487 = vmatpush1.msra.mxu0 %v428
        %488 = vmatprep.subr.mxu0 0.0
        %489 = vmatpush1.msra.mxu0 %v429
        %490 = vmatprep.subr.mxu0 0.0
        %491 = vmatpush1.msra.mxu0 %v430
        %492 = vmatprep.subr.mxu0 0.0
        %493 = vmatpush1.msra.mxu0 %v431
        %494 = vmatprep.subr.mxu0 0.0
        %495 = vmatpush1.msra.mxu0 %v432
        %496 = vmatprep.subr.mxu0 0.0
        %497 = vmatpush1.msra.mxu0 %v433
        %498 = vmatprep.subr.mxu0 0.0
        %499 = vmatpush1.msra.mxu0 %v434
        %500 = vmatprep.subr.mxu0 0.0
        %501 = vmatpush1.msra.mxu0 %v435
        %502 = vmatprep.subr.mxu0 0.0
        %503 = vmatpush1.msra.mxu0 %v436
        %504 = vmatprep.subr.mxu0 0.0
        %505 = vmatpush1.msra.mxu0 %v437
        %506 = vmatprep.mubr.f32.mxu0 %v403
        %507 = vmatmul.mubr.f32.gmra.mrb[0].mxu0 %v402
        %v508 = vpop.f32.mrb[0].mxu0
        %v509 = vadd.f32 %v441, %v508
        %v510 = vpop.f32.mrb[0].mxu0
        %511 = vmatprep.mubr.f32.mxu0 %v405
        %512 = vmatmul.mubr.f32.gmra.mrb[0].mxu0 %v404
        %v513 = vpop.f32.mrb[0].mxu0
        %v514 = vadd.f32 %v441, %v513
        %v515 = vpop.f32.mrb[0].mxu0
        %516 = vdwg.mxu0
        %517 = vadd.xlane.f32.xlu0 %v509
        %v518 = vpop.xlane.xlu0 %517
        %519 = vadd.xlane.f32.xlu0 %v514
        %v520 = vpop.xlane.xlu0 %519
        %v521 = vrcp.pop 128.0
        %v522 = vmul.f32 %v518, %v521
        %v523 = vmul.f32 %v520, %v521
        %v524 = vsub.f32 %v509, %v522
        %v525 = vsub.f32 %v514, %v523
        %v526 = vmul.f32 %v524, %v524
        %v527 = vmul.f32 %v525, %v525
        %528 = vadd.xlane.f32.xlu0 %v526
        %v529 = vpop.xlane.xlu0 %528
        %530 = vadd.xlane.f32.xlu0 %v527
        %v531 = vpop.xlane.xlu0 %530
        %v532 = vmul.f32 %v529, %v521
        %v533 = vmul.f32 %v531, %v521
        %v534 = vadd.f32 %v532, 1e-05
        %v535 = vadd.f32 %v533, 1e-05
        %v536 = vrsqrt.pop %v534
        %v537 = vrsqrt.pop %v535
        %v538 = vmul.f32 %v524, %v536
        %v539 = vmul.f32 %v525, %v537
        %v540 = vlaneseq
        %v541 = vshrl.u32 %v540, 7
        %v542 = vsub.s32 1, %v541
        %v543 = vrot.slane %v401, %v542
        %v544 = vmul.f32 %v538, %v543
        %v545 = vmul.f32 %v539, %v543
        %v546 = vlaneseq
        %v547 = vshrl.u32 %v546, 7
        %v548 = vsub.s32 2, %v547
        %v549 = vrot.slane %v401, %v548
        %v550 = vadd.f32 %v544, %v549
        %v551 = vadd.f32 %v545, %v549
        %v552 = vmul.f32 %v550, 0.5
        %v553 = vmul.f32 %v551, 0.5
        %v554 = vmul.f32 %v550, 0.70710677
        %v555 = vmul.f32 %v551, 0.70710677
        %v556 = verf.f32.pop %v554
        %v557 = verf.f32.pop %v555
        %v558 = vadd.f32 %v556, 1.0
        %v559 = vadd.f32 %v557, 1.0
        %v560 = vmul.f32 %v552, %v558
        %v561 = vmul.f32 %v553, %v559
        %v562 = vld [vmem:[#allocation9] sm:$0xff]
        %v563 = vld [vmem:[#allocation9 + $0x8] sm:$0xff]
        %v564 = vld [vmem:[#allocation9 + $0x10] sm:$0xff]
        %v565 = vld [vmem:[#allocation9 + $0x18] sm:$0xff]
        %v566 = vld [vmem:[#allocation9 + $0x20] sm:$0xff]
        %v567 = vld [vmem:[#allocation9 + $0x28] sm:$0xff]
        %v568 = vld [vmem:[#allocation9 + $0x30] sm:$0xff]
        %v569 = vld [vmem:[#allocation9 + $0x38] sm:$0xff]
        %v570 = vld [vmem:[#allocation9 + $0x40] sm:$0xff]
        %v571 = vld [vmem:[#allocation9 + $0x48] sm:$0xff]
        %v572 = vld [vmem:[#allocation9 + $0x50] sm:$0xff]
        %v573 = vld [vmem:[#allocation9 + $0x58] sm:$0xff]
        %v574 = vld [vmem:[#allocation9 + $0x60] sm:$0xff]
        %v575 = vld [vmem:[#allocation9 + $0x68] sm:$0xff]
        %v576 = vld [vmem:[#allocation9 + $0x70] sm:$0xff]
        %v577 = vld [vmem:[#allocation9 + $0x78] sm:$0xff]
        %v578 = vlaneseq
        %v579 = vshrl.u32 %v578, 7
        %v580 = vsub.s32 3, %v579
        %v581 = vrot.slane %v401, %v580
        %582 = vmatprep.subr.mxu0 0.0
        %583 = vmatpush1.msra.mxu0 %v562
        %584 = vmatprep.subr.mxu0 0.0
        %585 = vmatpush1.msra.mxu0 %v563
        %586 = vmatprep.subr.mxu0 0.0
        %587 = vmatpush1.msra.mxu0 %v564
        %588 = vmatprep.subr.mxu0 0.0
        %589 = vmatpush1.msra.mxu0 %v565
        %590 = vmatprep.subr.mxu0 0.0
        %591 = vmatpush1.msra.mxu0 %v566
        %592 = vmatprep.subr.mxu0 0.0
        %593 = vmatpush1.msra.mxu0 %v567
        %594 = vmatprep.subr.mxu0 0.0
        %595 = vmatpush1.msra.mxu0 %v568
        %596 = vmatprep.subr.mxu0 0.0
        %597 = vmatpush1.msra.mxu0 %v569
        %598 = vmatprep.subr.mxu0 0.0
        %599 = vmatpush1.msra.mxu0 %v570
        %600 = vmatprep.subr.mxu0 0.0
        %601 = vmatpush1.msra.mxu0 %v571
        %602 = vmatprep.subr.mxu0 0.0
        %603 = vmatpush1.msra.mxu0 %v572
        %604 = vmatprep.subr.mxu0 0.0
        %605 = vmatpush1.msra.mxu0 %v573
        %606 = vmatprep.subr.mxu0 0.0
        %607 = vmatpush1.msra.mxu0 %v574
        %608 = vmatprep.subr.mxu0 0.0
        %609 = vmatpush1.msra.mxu0 %v575
        %610 = vmatprep.subr.mxu0 0.0
        %611 = vmatpush1.msra.mxu0 %v576
        %612 = vmatprep.subr.mxu0 0.0
        %613 = vmatpush1.msra.mxu0 %v577
        %614 = vmatprep.subr.mxu0 0.0
        %615 = vmatpush1.msra.mxu0 0.0
        %616 = vmatprep.subr.mxu0 0.0
        %617 = vmatpush1.msra.mxu0 0.0
        %618 = vmatprep.subr.mxu0 0.0
        %619 = vmatpush1.msra.mxu0 0.0
        %620 = vmatprep.subr.mxu0 0.0
        %621 = vmatpush1.msra.mxu0 0.0
        %622 = vmatprep.subr.mxu0 0.0
        %623 = vmatpush1.msra.mxu0 0.0
        %624 = vmatprep.subr.mxu0 0.0
        %625 = vmatpush1.msra.mxu0 0.0
        %626 = vmatprep.subr.mxu0 0.0
        %627 = vmatpush1.msra.mxu0 0.0
        %628 = vmatprep.subr.mxu0 0.0
        %629 = vmatpush1.msra.mxu0 0.0
        %630 = vmatprep.subr.mxu0 0.0
        %631 = vmatpush1.msra.mxu0 0.0
        %632 = vmatprep.subr.mxu0 0.0
        %633 = vmatpush1.msra.mxu0 0.0
        %634 = vmatprep.subr.mxu0 0.0
        %635 = vmatpush1.msra.mxu0 0.0
        %636 = vmatprep.subr.mxu0 0.0
        %637 = vmatpush1.msra.mxu0 0.0
        %638 = vmatprep.subr.mxu0 0.0
        %639 = vmatpush1.msra.mxu0 0.0
        %640 = vmatprep.subr.mxu0 0.0
        %641 = vmatpush1.msra.mxu0 0.0
        %642 = vmatprep.subr.mxu0 0.0
        %643 = vmatpush1.msra.mxu0 0.0
        %644 = vmatprep.subr.mxu0 0.0
        %645 = vmatpush1.msra.mxu0 0.0
        %646 = vmatprep.mubr.f32.mxu0 0.0
        %647 = vmatmul.mubr.f32.gmra.mrb[0].mxu0 %v560
        %v648 = vpop.f32.mrb[0].mxu0
        %v649 = vadd.f32 %v581, %v648
        %v650 = vpop.f32.mrb[0].mxu0
        %651 = vmatprep.mubr.f32.mxu0 0.0
        %652 = vmatmul.mubr.f32.gmra.mrb[0].mxu0 %v561
        %v653 = vpop.f32.mrb[0].mxu0
        %v654 = vadd.f32 %v581, %v653
        %v655 = vpop.f32.mrb[0].mxu0
        %656 = vdwg.mxu0
        %657 = vadd.xlane.f32.xlu0 %v649
        %v658 = vpop.xlane.xlu0 %657
        %659 = vadd.xlane.f32.xlu0 %v654
        %v660 = vpop.xlane.xlu0 %659
        %v661 = vmul.f32 %v658, %v521
        %v662 = vmul.f32 %v660, %v521
        %v663 = vsub.f32 %v649, %v661
        %v664 = vsub.f32 %v654, %v662
        %v665 = vmul.f32 %v663, %v663
        %v666 = vmul.f32 %v664, %v664
        %667 = vadd.xlane.f32.xlu0 %v665
        %v668 = vpop.xlane.xlu0 %667
        %669 = vadd.xlane.f32.xlu0 %v666
        %v670 = vpop.xlane.xlu0 %669
        %v671 = vmul.f32 %v668, %v521
        %v672 = vmul.f32 %v670, %v521
        %v673 = vadd.f32 %v671, 1e-05
        %v674 = vadd.f32 %v672, 1e-05
        %v675 = vrsqrt.pop %v673
        %v676 = vrsqrt.pop %v674
        %v677 = vmul.f32 %v663, %v675
        %v678 = vmul.f32 %v664, %v676
        %v679 = vlaneseq
        %v680 = vshrl.u32 %v679, 7
        %v681 = vsub.s32 4, %v680
        %v682 = vrot.slane %v401, %v681
        %v683 = vmul.f32 %v677, %v682
        %v684 = vmul.f32 %v678, %v682
        %v685 = vlaneseq
        %v686 = vshrl.u32 %v685, 7
        %v687 = vsub.s32 5, %v686
        %v688 = vrot.slane %v401, %v687
        %v689 = vadd.f32 %v683, %v688
        %v690 = vadd.f32 %v684, %v688
        %v691 = vmul.f32 %v689, 0.5
        %v692 = vmul.f32 %v690, 0.5
        %v693 = vmul.f32 %v689, 0.70710677
        %v694 = vmul.f32 %v690, 0.70710677
        %v695 = verf.f32.pop %v693
        %v696 = verf.f32.pop %v694
        %v697 = vadd.f32 %v695, 1.0
        %v698 = vadd.f32 %v696, 1.0
        %v699 = vmul.f32 %v691, %v697
        %v700 = vmul.f32 %v692, %v698
        %v701 = vadd.f32 %v699, %v560
        %v702 = vadd.f32 %v700, %v561
        %v703 = vld [vmem:[#allocation10] sm:$0xff]
        %v704 = vld [vmem:[#allocation10 + $0x8] sm:$0xff]
        %v705 = vld [vmem:[#allocation10 + $0x10] sm:$0xff]
        %v706 = vld [vmem:[#allocation10 + $0x18] sm:$0xff]
        %v707 = vld [vmem:[#allocation10 + $0x20] sm:$0xff]
        %v708 = vld [vmem:[#allocation10 + $0x28] sm:$0xff]
        %v709 = vld [vmem:[#allocation10 + $0x30] sm:$0xff]
        %v710 = vld [vmem:[#allocation10 + $0x38] sm:$0xff]
        %v711 = vld [vmem:[#allocation10 + $0x40] sm:$0xff]
        %v712 = vld [vmem:[#allocation10 + $0x48] sm:$0xff]
        %v713 = vld [vmem:[#allocation10 + $0x50] sm:$0xff]
        %v714 = vld [vmem:[#allocation10 + $0x58] sm:$0xff]
        %v715 = vld [vmem:[#allocation10 + $0x60] sm:$0xff]
        %v716 = vld [vmem:[#allocation10 + $0x68] sm:$0xff]
        %v717 = vld [vmem:[#allocation10 + $0x70] sm:$0xff]
        %v718 = vld [vmem:[#allocation10 + $0x78] sm:$0xff]
        %v719 = vld [vmem:[%s399] sm:$0x1]
        %v721 = vlaneseq
        %v722 = vshrl.u32 %v721, 7
        %v723 = vsub.s32 0, %v722
        %v724 = vrot.slane %v719, %v723
        %726 = vmatprep.subr.mxu0 0.0
        %727 = vmatpush1.msra.mxu0 %v703
        %728 = vmatprep.subr.mxu0 0.0
        %729 = vmatpush1.msra.mxu0 %v704
        %730 = vmatprep.subr.mxu0 0.0
        %731 = vmatpush1.msra.mxu0 %v705
        %732 = vmatprep.subr.mxu0 0.0
        %733 = vmatpush1.msra.mxu0 %v706
        %734 = vmatprep.subr.mxu0 0.0
        %735 = vmatpush1.msra.mxu0 %v707
        %736 = vmatprep.subr.mxu0 0.0
        %737 = vmatpush1.msra.mxu0 %v708
        %738 = vmatprep.subr.mxu0 0.0
        %739 = vmatpush1.msra.mxu0 %v709
        %740 = vmatprep.subr.mxu0 0.0
        %741 = vmatpush1.msra.mxu0 %v710
        %742 = vmatprep.subr.mxu0 0.0
        %743 = vmatpush1.msra.mxu0 %v711
        %744 = vmatprep.subr.mxu0 0.0
        %745 = vmatpush1.msra.mxu0 %v712
        %746 = vmatprep.subr.mxu0 0.0
        %747 = vmatpush1.msra.mxu0 %v713
        %748 = vmatprep.subr.mxu0 0.0
        %749 = vmatpush1.msra.mxu0 %v714
        %750 = vmatprep.subr.mxu0 0.0
        %751 = vmatpush1.msra.mxu0 %v715
        %752 = vmatprep.subr.mxu0 0.0
        %753 = vmatpush1.msra.mxu0 %v716
        %754 = vmatprep.subr.mxu0 0.0
        %755 = vmatpush1.msra.mxu0 %v717
        %756 = vmatprep.subr.mxu0 0.0
        %757 = vmatpush1.msra.mxu0 %v718
        %758 = vmatprep.subr.mxu0 0.0
        %759 = vmatpush1.msra.mxu0 0.0
        %760 = vmatprep.subr.mxu0 0.0
        %761 = vmatpush1.msra.mxu0 0.0
        %762 = vmatprep.subr.mxu0 0.0
        %763 = vmatpush1.msra.mxu0 0.0
        %764 = vmatprep.subr.mxu0 0.0
        %765 = vmatpush1.msra.mxu0 0.0
        %766 = vmatprep.subr.mxu0 0.0
        %767 = vmatpush1.msra.mxu0 0.0
        %768 = vmatprep.subr.mxu0 0.0
        %769 = vmatpush1.msra.mxu0 0.0
        %770 = vmatprep.subr.mxu0 0.0
        %771 = vmatpush1.msra.mxu0 0.0
        %772 = vmatprep.subr.mxu0 0.0
        %773 = vmatpush1.msra.mxu0 0.0
        %774 = vmatprep.subr.mxu0 0.0
        %775 = vmatpush1.msra.mxu0 0.0
        %776 = vmatprep.subr.mxu0 0.0
        %777 = vmatpush1.msra.mxu0 0.0
        %778 = vmatprep.subr.mxu0 0.0
        %779 = vmatpush1.msra.mxu0 0.0
        %780 = vmatprep.subr.mxu0 0.0
        %781 = vmatpush1.msra.mxu0 0.0
        %782 = vmatprep.subr.mxu0 0.0
        %783 = vmatpush1.msra.mxu0 0.0
        %784 = vmatprep.subr.mxu0 0.0
        %785 = vmatpush1.msra.mxu0 0.0
        %786 = vmatprep.subr.mxu0 0.0
        %787 = vmatpush1.msra.mxu0 0.0
        %788 = vmatprep.subr.mxu0 0.0
        %789 = vmatpush1.msra.mxu0 0.0
        %790 = vmatprep.mubr.f32.mxu0 0.0
        %791 = vmatmul.mubr.f32.gmra.mrb[0].mxu0 %v701
        %v792 = vpop.f32.mrb[0].mxu0
        %v793 = vadd.f32 %v724, %v792
        %v794 = vpop.f32.mrb[0].mxu0
        %795 = vmatprep.mubr.f32.mxu0 0.0
        %796 = vmatmul.mubr.f32.gmra.mrb[0].mxu0 %v702
        %v797 = vpop.f32.mrb[0].mxu0
        %v798 = vadd.f32 %v724, %v797
        %v799 = vpop.f32.mrb[0].mxu0
        %800 = vdwg.mxu0
        %801 = vst [vmem:[%s390] sm:$0xff] %v793
        %802 = vst [vmem:[%s390 + $0x8] sm:$0xff] %v798
        %s803 = sand.u32 %s214, 1
        %s804 = scalar_lea.sflag [#allocation6], %s803
        %s805 = sand.u32 %s214, 1
        %s806 = smul.addr %s805, 16
        %s807 = scalar_lea.vmem [#allocation12], %s806
        // Predicated region
        $region61: #{tpu_custom_call.1} parent=43 // pred_check
          %p808 = pneg %p224
        $region62: #{tpu_custom_call.1} parent=43 // pred_check_branch
          %810 = sbr.rel (%p808) target = $region64
        $region63: #{tpu_custom_call.1} parent=43 // pred_region
          %s811 = smul.u32 2, %s37
          %s813 = ssub.s32 256, 256
          %814 = vsyncadd %s804, %s813
          %s815 = smul.addr %s36, 2
          %s816 = sadd.s32 %s811, %s815
          %s817 = smul.addr %s816, 128
          %s818 = scalar_lea.hbm %s7, %s817
          %s819 = sshll.u32 %s807, 4
          %s820 = int_to_ptr.vmem [resolvable:$true] %s819
          %825 = dma.vmem_to_hbm [thread:$0]  %s820, 256, %s818, %s804, 128, 128, 8
        $region64: #{tpu_custom_call.1} parent=43 // pred_fallthru
          _
      $region44: #{tpu_custom_call.1} parent=5 // pred_fallthru
        _
      %p826 = scmp.le.s32.totalorder 2, %s27
      // Predicated region
      $region65: #{tpu_custom_call.1} parent=5 // pred_check
        %p827 = pneg %p826
      $region66: #{tpu_custom_call.1} parent=5 // pred_check_branch
        %829 = sbr.rel (%p827) target = $region68
      $region67: #{tpu_custom_call.1} parent=5 // pred_region
        %s830 = ssub.s32 %s27, 2
        // Predicated region
        $region69: #{tpu_custom_call.1} parent=67 // pred_check
          %p831 = pneg %p230
        $region70: #{tpu_custom_call.1} parent=67 // pred_check_branch
          %833 = sbr.rel (%p831) target = $region72
        $region71: #{tpu_custom_call.1} parent=67 // pred_region
          %s834 = sand.u32 %s215, 1
          %s835 = scalar_lea.sflag [#allocation6], %s834
          %s836 = sand.u32 %s215, 1
          %s837 = smul.addr %s836, 16
          %s838 = scalar_lea.vmem [#allocation12], %s837
          %839 = dma.done %s835, 256
        $region72: #{tpu_custom_call.1} parent=67 // pred_fallthru
          _
      $region68: #{tpu_custom_call.1} parent=5 // pred_fallthru
        _
    $region6: #{tpu_custom_call.1} parent=1 // loop_footer
      %s31 = sadd.s32 1, %s27
    $region7: #{tpu_custom_call.1} parent=1 // loop_footer_branch
      %26 = sbr.rel target = $region3
    $region8: #{tpu_custom_call.1} parent=1 // loop_exit
      _
    %840 = vsyncpa [#allocation5], 1
    %s841 = scalar_lea.sflag [#allocation5], 1
    %842 = vsyncpa %s841, 1
    %843 = vsyncpa [#allocation8], 1
    %844 = vsyncpa [#allocation11], 1
    %845 = vsyncpa [#allocation6], 1
    %s846 = scalar_lea.sflag [#allocation6], 1
    %847 = vsyncpa %s846, 1

// kernel: tpu_custom_call.1
$region0: #{tpu_custom_call.1}
  #allocation0 [shape = 'u32[]', space=smem, size = 0x4, offset = 0x4, fixed_abs, tag = 'smem constant byte address 0x4 - core index']
  #allocation1 [shape = 'u32[144,128]{1,0:T(1,128)}', space=vmem, size = 0x12000, scoped, tag = 'internal scratch']
  #allocation2 [shape = 's32[1]{0}', space=sflag, size = 0x4, scoped, tag = 'scoped memory for tpu_custom_call.1']
  #allocation3 [shape = 'u8[512]{0}', space=smem, size = 0x200, scoped, tag = 'prefetched SMEM operand 0']
  %s0 = inlined_call_operand.vmem [shape: s32[4], index: 0, kind: input, shape index: {}]
  %s1 = inlined_call_operand.hbm [shape: f32[2,16,256], index: 1, kind: input, shape index: {}]
  %s2 = inlined_call_operand.hbm [shape: f32[4,256,128], index: 2, kind: input, shape index: {}]
  %s3 = inlined_call_operand.hbm [shape: f32[4,128,128], index: 3, kind: input, shape index: {}]
  %s4 = inlined_call_operand.hbm [shape: f32[4,128,128], index: 4, kind: input, shape index: {}]
  %s5 = inlined_call_operand.vmem [shape: f32[4,6,128], index: 5, kind: input, shape index: {}]
  %s6 = inlined_call_operand.vmem [shape: f32[4,1,128], index: 6, kind: input, shape index: {}]
  %s7 = inlined_call_operand.hbm [shape: f32[4,16,128], index: 7, kind: output, shape index: {}]
  %s8 = sld [smem:[#allocation0]]
  $region73: #{tpu_custom_call.1} parent=0
    _
  %s10 = ssub.s32 1, %s8
  %s11 = scalar_select 0, %s10, %s8
  %s12 = sshll.u32 %s0, 4
  %s13 = int_to_ptr.vmem [resolvable:$true] %s12
  %15 = dma.vmem_to_smem %s13, 16, [#allocation3], [#allocation2]
  %16 = dma.done [#allocation2], 16
  %17 = sfence
  $region1: #{tpu_custom_call.1} parent=0
    #allocation4 [shape = 'u8[32768]{0}', space=vmem, size = 0x8000, scoped, tag = 'input window, operand 1']
    #allocation5 [shape = 's32[2]{0}', space=sflag, size = 0x8, scoped, tag = 'scoped memory for tpu_custom_call.1']
    #allocation6 [shape = 's32[2]{0}', space=sflag, size = 0x8, scoped, tag = 'scoped memory for tpu_custom_call.1']
    #allocation7 [shape = 'u8[262144]{0}', space=vmem, size = 0x40000, scoped, tag = 'input window, operand 2']
    #allocation8 [shape = 's32[2]{0}', space=sflag, size = 0x8, scoped, tag = 'scoped memory for tpu_custom_call.1']
    #allocation9 [shape = 'u8[131072]{0}', space=vmem, size = 0x20000, scoped, tag = 'input window, operand 3']
    #allocation10 [shape = 'u8[131072]{0}', space=vmem, size = 0x20000, scoped, tag = 'input window, operand 4']
    #allocation11 [shape = 's32[2]{0}', space=sflag, size = 0x8, scoped, tag = 'scoped memory for tpu_custom_call.1']
    #allocation12 [shape = 'u8[16384]{0}', space=vmem, size = 0x4000, scoped, tag = 'output window, operand 0']
    %18 = vsyncpa [#allocation5], 0
    %s19 = scalar_lea.sflag [#allocation5], 1
    %20 = vsyncpa %s19, 0
    %21 = vsyncpa [#allocation8], 0
    %s22 = scalar_lea.sflag [#allocation8], 1
    %23 = vsyncpa %s22, 0
    %24 = vsyncpa [#allocation11], 0
    %s25 = scalar_lea.sflag [#allocation11], 1
    %26 = vsyncpa %s25, 0
    %27 = vsyncpa [#allocation6], 0
    %s28 = scalar_lea.sflag [#allocation6], 1
    %29 = vsyncpa %s28, 0
    loop: start=0, step=1, limit=6
    $region2: #{tpu_custom_call.1} parent=1 // loop_pre_header
      _
    $region3: #{tpu_custom_call.1} parent=1 // loop_header
      %s31 = sphi 0, %s35
      %p32 = scmp.ge.s32.totalorder %s31, 6
      %s38 = sphi 0, %s50
      %s39 = sphi 0, %s46
      %s40 = sphi 0, %s38
      %s41 = sphi 0, %s39
      %s42 = sphi 0, %s40
      %s43 = sphi 0, %s41
      %s57 = sphi 0, %s59
      %s60 = sphi 0, %s57
      %s61 = sphi 0, %s60
      %s77 = sphi 0, %s61
      %s83 = sphi 0, %s85
      %s86 = sphi 0, %s83
      %s87 = sphi 0, %s86
      %s103 = sphi 0, %s87
      %s109 = sphi 0, %s111
      %s112 = sphi 0, %s109
      %s113 = sphi 0, %s112
      %s129 = sphi 0, %s113
      %s135 = sphi 0, %s137
      %s138 = sphi 0, %s135
      %s139 = sphi 0, %s138
      %s155 = sphi 0, %s139
      %s161 = sphi 0, %s163
      %s164 = sphi 0, %s161
      %s165 = sphi 0, %s164
      %s181 = sphi 0, %s165
      %s187 = sphi 0, %s189
      %s190 = sphi 0, %s187
      %s191 = sphi 0, %s190
      %s207 = sphi 0, %s191
      %s215 = sphi 0, %s217
      %s218 = sphi 0, %s215
      %s219 = sphi 0, %s218
      %s235 = sphi 0, %s219
    $region4: #{tpu_custom_call.1} parent=1 // loop_header_branch
      %34 = sbr.rel (%p32) target = $region8
    $region5: #{tpu_custom_call.1} parent=1 // loop_body
      %s36 = ssub.s32 %s31, 1
      %s37 = ssub.s32 %s31, 2
      %s44 = sadd.s32 1, %s39
      %p45 = scmp.ge.s32.totalorder %s44, 1
      %s46 = scalar_select %p45, 0, %s44
      %s47 = sadd.s32 1, %s38
      %s48 = scalar_select %p45, %s47, %s38
      %p49 = scmp.ge.s32.totalorder %s48, 4
      %s50 = scalar_select %p49, 0, %s48
      %s51 = sld [smem:[#allocation3 + %s38]]
      %s52 = sld [smem:[#allocation3 + %s50]]
      %s53 = ssub.s32 %s51, %s52
      %s54 = ssub.s32 %s39, %s46
      %s55 = sor.u32 %s53, %s54
      %p56 = scmp.eq.s32.totalorder %s55, 0
      %s58 = sadd.s32 %s57, 1
      %s59 = scalar_select %p56, %s57, %s58
      %p62 = pneg %p56
      %p63 = scmp.eq.s32.totalorder %s31, 3
      %p64 = por %p62, %p63
      %p65 = scmp.ne.s32.totalorder %s57, %s60
      %p66 = scmp.eq.s32.totalorder %s31, 0
      %p67 = por %p65, %p66
      %p68 = scmp.ne.s32.totalorder %s57, %s60
      %p69 = scmp.eq.s32.totalorder %s36, 3
      %p70 = por %p68, %p69
      %p71 = scmp.ne.s32.totalorder %s60, %s61
      %p72 = scmp.eq.s32.totalorder %s36, 0
      %p73 = por %p71, %p72
      %p74 = scmp.ne.s32.totalorder %s60, %s61
      %p75 = scmp.eq.s32.totalorder %s37, 3
      %p76 = por %p74, %p75
      %p78 = scmp.ne.s32.totalorder %s61, %s77
      %p79 = scmp.eq.s32.totalorder %s37, 0
      %p80 = por %p78, %p79
      %s81 = ssub.s32 %s38, %s50
      %p82 = scmp.eq.s32.totalorder %s81, 0
      %s84 = sadd.s32 %s83, 1
      %s85 = scalar_select %p82, %s83, %s84
      %p88 = pneg %p82
      %p89 = scmp.eq.s32.totalorder %s31, 3
      %p90 = por %p88, %p89
      %p91 = scmp.ne.s32.totalorder %s83, %s86
      %p92 = scmp.eq.s32.totalorder %s31, 0
      %p93 = por %p91, %p92
      %p94 = scmp.ne.s32.totalorder %s83, %s86
      %p95 = scmp.eq.s32.totalorder %s36, 3
      %p96 = por %p94, %p95
      %p97 = scmp.ne.s32.totalorder %s86, %s87
      %p98 = scmp.eq.s32.totalorder %s36, 0
      %p99 = por %p97, %p98
      %p100 = scmp.ne.s32.totalorder %s86, %s87
      %p101 = scmp.eq.s32.totalorder %s37, 3
      %p102 = por %p100, %p101
      %p104 = scmp.ne.s32.totalorder %s87, %s103
      %p105 = scmp.eq.s32.totalorder %s37, 0
      %p106 = por %p104, %p105
      %s107 = ssub.s32 %s38, %s50
      %p108 = scmp.eq.s32.totalorder %s107, 0
      %s110 = sadd.s32 %s109, 1
      %s111 = scalar_select %p108, %s109, %s110
      %p114 = pneg %p108
      %p115 = scmp.eq.s32.totalorder %s31, 3
      %p116 = por %p114, %p115
      %p117 = scmp.ne.s32.totalorder %s109, %s112
      %p118 = scmp.eq.s32.totalorder %s31, 0
      %p119 = por %p117, %p118
      %p120 = scmp.ne.s32.totalorder %s109, %s112
      %p121 = scmp.eq.s32.totalorder %s36, 3
      %p122 = por %p120, %p121
      %p123 = scmp.ne.s32.totalorder %s112, %s113
      %p124 = scmp.eq.s32.totalorder %s36, 0
      %p125 = por %p123, %p124
      %p126 = scmp.ne.s32.totalorder %s112, %s113
      %p127 = scmp.eq.s32.totalorder %s37, 3
      %p128 = por %p126, %p127
      %p130 = scmp.ne.s32.totalorder %s113, %s129
      %p131 = scmp.eq.s32.totalorder %s37, 0
      %p132 = por %p130, %p131
      %s133 = ssub.s32 %s38, %s50
      %p134 = scmp.eq.s32.totalorder %s133, 0
      %s136 = sadd.s32 %s135, 1
      %s137 = scalar_select %p134, %s135, %s136
      %p140 = pneg %p134
      %p141 = scmp.eq.s32.totalorder %s31, 3
      %p142 = por %p140, %p141
      %p143 = scmp.ne.s32.totalorder %s135, %s138
      %p144 = scmp.eq.s32.totalorder %s31, 0
      %p145 = por %p143, %p144
      %p146 = scmp.ne.s32.totalorder %s135, %s138
      %p147 = scmp.eq.s32.totalorder %s36, 3
      %p148 = por %p146, %p147
      %p149 = scmp.ne.s32.totalorder %s138, %s139
      %p150 = scmp.eq.s32.totalorder %s36, 0
      %p151 = por %p149, %p150
      %p152 = scmp.ne.s32.totalorder %s138, %s139
      %p153 = scmp.eq.s32.totalorder %s37, 3
      %p154 = por %p152, %p153
      %p156 = scmp.ne.s32.totalorder %s139, %s155
      %p157 = scmp.eq.s32.totalorder %s37, 0
      %p158 = por %p156, %p157
      %s159 = ssub.s32 %s38, %s50
      %p160 = scmp.eq.s32.totalorder %s159, 0
      %s162 = sadd.s32 %s161, 1
      %s163 = scalar_select %p160, %s161, %s162
      %p166 = pneg %p160
      %p167 = scmp.eq.s32.totalorder %s31, 3
      %p168 = por %p166, %p167
      %p169 = scmp.ne.s32.totalorder %s161, %s164
      %p170 = scmp.eq.s32.totalorder %s31, 0
      %p171 = por %p169, %p170
      %p172 = scmp.ne.s32.totalorder %s161, %s164
      %p173 = scmp.eq.s32.totalorder %s36, 3
      %p174 = por %p172, %p173
      %p175 = scmp.ne.s32.totalorder %s164, %s165
      %p176 = scmp.eq.s32.totalorder %s36, 0
      %p177 = por %p175, %p176
      %p178 = scmp.ne.s32.totalorder %s164, %s165
      %p179 = scmp.eq.s32.totalorder %s37, 3
      %p180 = por %p178, %p179
      %p182 = scmp.ne.s32.totalorder %s165, %s181
      %p183 = scmp.eq.s32.totalorder %s37, 0
      %p184 = por %p182, %p183
      %s185 = ssub.s32 %s38, %s50
      %p186 = scmp.eq.s32.totalorder %s185, 0
      %s188 = sadd.s32 %s187, 1
      %s189 = scalar_select %p186, %s187, %s188
      %p192 = pneg %p186
      %p193 = scmp.eq.s32.totalorder %s31, 3
      %p194 = por %p192, %p193
      %p195 = scmp.ne.s32.totalorder %s187, %s190
      %p196 = scmp.eq.s32.totalorder %s31, 0
      %p197 = por %p195, %p196
      %p198 = scmp.ne.s32.totalorder %s187, %s190
      %p199 = scmp.eq.s32.totalorder %s36, 3
      %p200 = por %p198, %p199
      %p201 = scmp.ne.s32.totalorder %s190, %s191
      %p202 = scmp.eq.s32.totalorder %s36, 0
      %p203 = por %p201, %p202
      %p204 = scmp.ne.s32.totalorder %s190, %s191
      %p205 = scmp.eq.s32.totalorder %s37, 3
      %p206 = por %p204, %p205
      %p208 = scmp.ne.s32.totalorder %s191, %s207
      %p209 = scmp.eq.s32.totalorder %s37, 0
      %p210 = por %p208, %p209
      %s211 = ssub.s32 %s38, %s50
      %s212 = ssub.s32 %s39, %s46
      %s213 = sor.u32 %s211, %s212
      %p214 = scmp.eq.s32.totalorder %s213, 0
      %s216 = sadd.s32 %s215, 1
      %s217 = scalar_select %p214, %s215, %s216
      %p220 = pneg %p214
      %p221 = scmp.eq.s32.totalorder %s31, 3
      %p222 = por %p220, %p221
      %p223 = scmp.ne.s32.totalorder %s215, %s218
      %p224 = scmp.eq.s32.totalorder %s31, 0
      %p225 = por %p223, %p224
      %p226 = scmp.ne.s32.totalorder %s215, %s218
      %p227 = scmp.eq.s32.totalorder %s36, 3
      %p228 = por %p226, %p227
      %p229 = scmp.ne.s32.totalorder %s218, %s219
      %p230 = scmp.eq.s32.totalorder %s36, 0
      %p231 = por %p229, %p230
      %p232 = scmp.ne.s32.totalorder %s218, %s219
      %p233 = scmp.eq.s32.totalorder %s37, 3
      %p234 = por %p232, %p233
      %p236 = scmp.ne.s32.totalorder %s219, %s235
      %p237 = scmp.eq.s32.totalorder %s37, 0
      %p238 = por %p236, %p237
      %p239 = scmp.le.s32.totalorder 1, %s31
      %p240 = scmp.lt.s32.totalorder %s31, 5
      %p241 = pnand %p239, %p240
      %p242 = pneg %p241
      // Predicated region
      $region9: #{tpu_custom_call.1} parent=5 // pred_check
        _
      $region10: #{tpu_custom_call.1} parent=5 // pred_check_branch
        %244 = sbr.rel (%p241) target = $region12
      $region11: #{tpu_custom_call.1} parent=5 // pred_region
        %s245 = ssub.s32 %s31, 1
      $region12: #{tpu_custom_call.1} parent=5 // pred_fallthru
        _
      %p246 = scmp.lt.s32.totalorder %s31, 4
      // Predicated region
      $region13: #{tpu_custom_call.1} parent=5 // pred_check
        %p247 = pneg %p246
      $region14: #{tpu_custom_call.1} parent=5 // pred_check_branch
        %249 = sbr.rel (%p247) target = $region16
      $region15: #{tpu_custom_call.1} parent=5 // pred_region
        // Predicated region
        $region17: #{tpu_custom_call.1} parent=15 // pred_check
          %p250 = pneg %p67
        $region18: #{tpu_custom_call.1} parent=15 // pred_check_branch
          %252 = sbr.rel (%p250) target = $region20
        $region19: #{tpu_custom_call.1} parent=15 // pred_region
          %s253 = sand.u32 %s57, 1
          %s254 = scalar_lea.sflag [#allocation5], %s253
          %s255 = sand.u32 %s57, 1
          %s256 = smul.addr %s255, 32
          %s257 = scalar_lea.vmem [#allocation4], %s256
          %s258 = sld [smem:[#allocation3 + %s38]]
          %s259 = smul.u32 2, %s39
          %s261 = ssub.s32 512, 512
          %262 = vsyncadd %s254, %s261
          %s263 = smul.addr %s259, 2
          %s264 = smul.addr %s258, 4
          %s265 = sadd.s32 %s263, %s264
          %s266 = smul.addr %s265, 128
          %s267 = scalar_lea.hbm %s1, %s266
          %s268 = sshll.u32 %s257, 4
          %s269 = int_to_ptr.vmem [resolvable:$true] %s268
          %274 = dma.hbm_to_vmem [thread:$0]  %s267, 512, %s269, %s254, 256, 256, 16
        $region20: #{tpu_custom_call.1} parent=15 // pred_fallthru
          _
        // Predicated region
        $region21: #{tpu_custom_call.1} parent=15 // pred_check
          %p275 = pneg %p93
        $region22: #{tpu_custom_call.1} parent=15 // pred_check_branch
          %277 = sbr.rel (%p275) target = $region24
        $region23: #{tpu_custom_call.1} parent=15 // pred_region
          %s278 = sand.u32 %s31, 1
          %s279 = scalar_lea.sflag [#allocation8], %s278
          %s280 = sand.u32 %s83, 1
          %s281 = smul.addr %s280, 256
          %s282 = scalar_lea.vmem [#allocation7], %s281
          %s284 = ssub.s32 4096, 4096
          %285 = vsyncadd %s279, %s284
          %s286 = smul.addr %s38, 32
          %s287 = smul.addr %s286, 128
          %s288 = scalar_lea.hbm %s2, %s287
          %s289 = sshll.u32 %s282, 4
          %s290 = int_to_ptr.vmem [resolvable:$true] %s289
          %295 = dma.hbm_to_vmem [thread:$0]  %s288, 4096, %s290, %s279, 128, 128, 8
        $region24: #{tpu_custom_call.1} parent=15 // pred_fallthru
          _
        // Predicated region
        $region25: #{tpu_custom_call.1} parent=15 // pred_check
          %p296 = pneg %p119
        $region26: #{tpu_custom_call.1} parent=15 // pred_check_branch
          %298 = sbr.rel (%p296) target = $region28
        $region27: #{tpu_custom_call.1} parent=15 // pred_region
          %s299 = sand.u32 %s31, 1
          %s300 = scalar_lea.sflag [#allocation8], %s299
          %s301 = sand.u32 %s109, 1
          %s302 = smul.addr %s301, 128
          %s303 = scalar_lea.vmem [#allocation9], %s302
          %s305 = ssub.s32 2048, 2048
          %306 = vsyncadd %s300, %s305
          %s307 = smul.addr %s38, 16
          %s308 = smul.addr %s307, 128
          %s309 = scalar_lea.hbm %s3, %s308
          %s310 = sshll.u32 %s303, 4
          %s311 = int_to_ptr.vmem [resolvable:$true] %s310
          %316 = dma.hbm_to_vmem [thread:$0]  %s309, 2048, %s311, %s300, 128, 128, 8
        $region28: #{tpu_custom_call.1} parent=15 // pred_fallthru
          _
        // Predicated region
        $region29: #{tpu_custom_call.1} parent=15 // pred_check
          %p317 = pneg %p145
        $region30: #{tpu_custom_call.1} parent=15 // pred_check_branch
          %319 = sbr.rel (%p317) target = $region32
        $region31: #{tpu_custom_call.1} parent=15 // pred_region
          %s320 = sand.u32 %s135, 1
          %s321 = scalar_lea.sflag [#allocation11], %s320
          %s322 = sand.u32 %s135, 1
          %s323 = smul.addr %s322, 128
          %s324 = scalar_lea.vmem [#allocation10], %s323
          %s326 = ssub.s32 2048, 2048
          %327 = vsyncadd %s321, %s326
          %s328 = smul.addr %s38, 16
          %s329 = smul.addr %s328, 128
          %s330 = scalar_lea.hbm %s4, %s329
          %s331 = sshll.u32 %s324, 4
          %s332 = int_to_ptr.vmem [resolvable:$true] %s331
          %337 = dma.hbm_to_vmem [thread:$0]  %s330, 2048, %s332, %s321, 128, 128, 8
        $region32: #{tpu_custom_call.1} parent=15 // pred_fallthru
          _
        // Predicated region
        $region33: #{tpu_custom_call.1} parent=15 // pred_check
          %p338 = pneg %p171
        $region34: #{tpu_custom_call.1} parent=15 // pred_check_branch
          %340 = sbr.rel (%p338) target = $region36
        $region35: #{tpu_custom_call.1} parent=15 // pred_region
          %p341 = scmp.lt.s32.totalorder %s38, 3
          %s342 = scalar_select %p341, %s38, 3
          %s343 = smul.addr %s342, 8
          %s344 = scalar_lea.vmem %s5, %s343
        $region36: #{tpu_custom_call.1} parent=15 // pred_fallthru
          _
        // Predicated region
        $region37: #{tpu_custom_call.1} parent=15 // pred_check
          %p345 = pneg %p197
        $region38: #{tpu_custom_call.1} parent=15 // pred_check_branch
          %347 = sbr.rel (%p345) target = $region40
        $region39: #{tpu_custom_call.1} parent=15 // pred_region
          %p348 = scmp.lt.s32.totalorder %s38, 3
          %s349 = scalar_select %p348, %s38, 3
          %s350 = scalar_lea.vmem %s6, %s349
        $region40: #{tpu_custom_call.1} parent=15 // pred_fallthru
          _
      $region16: #{tpu_custom_call.1} parent=5 // pred_fallthru
        _
      %p351 = scmp.le.s32.totalorder 1, %s31
      %p352 = scmp.lt.s32.totalorder %s31, 5
      %p353 = pnand %p351, %p352
      %p354 = pneg %p353
      // Predicated region
      $region41: #{tpu_custom_call.1} parent=5 // pred_check
        _
      $region42: #{tpu_custom_call.1} parent=5 // pred_check_branch
        %356 = sbr.rel (%p353) target = $region44
      $region43: #{tpu_custom_call.1} parent=5 // pred_region
        %s357 = ssub.s32 %s31, 1
        %s358 = sand.u32 %s60, 1
        %s359 = scalar_lea.sflag [#allocation5], %s358
        %s360 = sand.u32 %s60, 1
        %s361 = smul.addr %s360, 32
        %s362 = scalar_lea.vmem [#allocation4], %s361
        // Predicated region
        $region45: #{tpu_custom_call.1} parent=43 // pred_check
          %p363 = pneg %p73
        $region46: #{tpu_custom_call.1} parent=43 // pred_check_branch
          %365 = sbr.rel (%p363) target = $region48
        $region47: #{tpu_custom_call.1} parent=43 // pred_region
          %366 = dma.done %s359, 512
        $region48: #{tpu_custom_call.1} parent=43 // pred_fallthru
          _
        %s367 = sand.u32 %s36, 1
        %s368 = scalar_lea.sflag [#allocation8], %s367
        %s369 = sand.u32 %s86, 1
        %s370 = smul.addr %s369, 256
        %s371 = scalar_lea.vmem [#allocation7], %s370
        // Predicated region
        $region49: #{tpu_custom_call.1} parent=43 // pred_check
          %p372 = pneg %p99
        $region50: #{tpu_custom_call.1} parent=43 // pred_check_branch
          %374 = sbr.rel (%p372) target = $region52
        $region51: #{tpu_custom_call.1} parent=43 // pred_region
          %375 = dma.done %s368, 4096
        $region52: #{tpu_custom_call.1} parent=43 // pred_fallthru
          _
        %s376 = sand.u32 %s36, 1
        %s377 = scalar_lea.sflag [#allocation8], %s376
        %s378 = sand.u32 %s112, 1
        %s379 = smul.addr %s378, 128
        %s380 = scalar_lea.vmem [#allocation9], %s379
        // Predicated region
        $region53: #{tpu_custom_call.1} parent=43 // pred_check
          %p381 = pneg %p125
        $region54: #{tpu_custom_call.1} parent=43 // pred_check_branch
          %383 = sbr.rel (%p381) target = $region56
        $region55: #{tpu_custom_call.1} parent=43 // pred_region
          %384 = dma.done %s377, 2048
        $region56: #{tpu_custom_call.1} parent=43 // pred_fallthru
          _
        %s385 = sand.u32 %s138, 1
        %s386 = scalar_lea.sflag [#allocation11], %s385
        %s387 = sand.u32 %s138, 1
        %s388 = smul.addr %s387, 128
        %s389 = scalar_lea.vmem [#allocation10], %s388
        // Predicated region
        $region57: #{tpu_custom_call.1} parent=43 // pred_check
          %p390 = pneg %p151
        $region58: #{tpu_custom_call.1} parent=43 // pred_check_branch
          %392 = sbr.rel (%p390) target = $region60
        $region59: #{tpu_custom_call.1} parent=43 // pred_region
          %393 = dma.done %s386, 2048
        $region60: #{tpu_custom_call.1} parent=43 // pred_fallthru
          _
        %s394 = sand.u32 %s60, 1
        %s395 = scalar_lea.sflag [#allocation5], %s394
        %s396 = sand.u32 %s60, 1
        %s397 = smul.addr %s396, 32
        %s398 = scalar_lea.vmem [#allocation4], %s397
        %p399 = pneg %p73
        %p400 = pneg %p70
        %s401 = sand.u32 %s36, 1
        %s402 = scalar_lea.sflag [#allocation8], %s401
        %s403 = sand.u32 %s86, 1
        %s404 = smul.addr %s403, 256
        %s405 = scalar_lea.vmem [#allocation7], %s404
        %p406 = pneg %p99
        %p407 = pneg %p96
        %s408 = sand.u32 %s36, 1
        %s409 = scalar_lea.sflag [#allocation8], %s408
        %s410 = sand.u32 %s112, 1
        %s411 = smul.addr %s410, 128
        %s412 = scalar_lea.vmem [#allocation9], %s411
        %p413 = pneg %p125
        %p414 = pneg %p122
        %s415 = sand.u32 %s138, 1
        %s416 = scalar_lea.sflag [#allocation11], %s415
        %s417 = sand.u32 %s138, 1
        %s418 = smul.addr %s417, 128
        %s419 = scalar_lea.vmem [#allocation10], %s418
        %p420 = pneg %p151
        %p421 = pneg %p148
        %p422 = scmp.lt.s32.totalorder %s40, 3
        %s423 = scalar_select %p422, %s40, 3
        %s424 = smul.addr %s423, 8
        %s425 = scalar_lea.vmem %s5, %s424
        %p426 = pneg %p177
        %p427 = pneg %p174
        %p428 = scmp.lt.s32.totalorder %s40, 3
        %s429 = scalar_select %p428, %s40, 3
        %s430 = scalar_lea.vmem %s6, %s429
        %p431 = pneg %p203
        %p432 = pneg %p200
        %p433 = pneg %p231
        %p434 = pneg %p228
        %s435 = sand.u32 %s218, 1
        %s436 = scalar_lea.sflag [#allocation6], %s435
        %s437 = sand.u32 %s218, 1
        %s438 = smul.addr %s437, 16
        %s439 = scalar_lea.vmem [#allocation12], %s438
        %s440 = sld [smem:[#allocation3 + %s40]]
        %s441 = smul.u32 2, %s41
        %p442 = scmp.lt.s32.totalorder %s40, 3
        %s443 = scalar_select %p442, %s40, 3
        %s444 = smul.addr %s443, 8
        %s445 = scalar_lea.vmem %s5, %s444
        %p446 = scmp.lt.s32.totalorder %s40, 3
        %s447 = scalar_select %p446, %s40, 3
        %s448 = scalar_lea.vmem %s6, %s447
        %s449 = smul.u32 2, %s41
        %v450 = vld [vmem:[%s445] sm:$0x3f]
        %v451 = vld [vmem:[%s362] sm:$0xff]
        %v452 = vld [vmem:[%s362 + $0x8] sm:$0xff]
        %v453 = vld [vmem:[%s362 + $0x10] sm:$0xff]
        %v454 = vld [vmem:[%s362 + $0x18] sm:$0xff]
        %v455 = vld [vmem:[%s371] sm:$0xff]
        %v456 = vld [vmem:[%s371 + $0x8] sm:$0xff]
        %v457 = vld [vmem:[%s371 + $0x10] sm:$0xff]
        %v458 = vld [vmem:[%s371 + $0x18] sm:$0xff]
        %v459 = vld [vmem:[%s371 + $0x20] sm:$0xff]
        %v460 = vld [vmem:[%s371 + $0x28] sm:$0xff]
        %v461 = vld [vmem:[%s371 + $0x30] sm:$0xff]
        %v462 = vld [vmem:[%s371 + $0x38] sm:$0xff]
        %v463 = vld [vmem:[%s371 + $0x40] sm:$0xff]
        %v464 = vld [vmem:[%s371 + $0x48] sm:$0xff]
        %v465 = vld [vmem:[%s371 + $0x50] sm:$0xff]
        %v466 = vld [vmem:[%s371 + $0x58] sm:$0xff]
        %v467 = vld [vmem:[%s371 + $0x60] sm:$0xff]
        %v468 = vld [vmem:[%s371 + $0x68] sm:$0xff]
        %v469 = vld [vmem:[%s371 + $0x70] sm:$0xff]
        %v470 = vld [vmem:[%s371 + $0x78] sm:$0xff]
        %v471 = vld [vmem:[%s371 + $0x80] sm:$0xff]
        %v472 = vld [vmem:[%s371 + $0x88] sm:$0xff]
        %v473 = vld [vmem:[%s371 + $0x90] sm:$0xff]
        %v474 = vld [vmem:[%s371 + $0x98] sm:$0xff]
        %v475 = vld [vmem:[%s371 + $0xa0] sm:$0xff]
        %v476 = vld [vmem:[%s371 + $0xa8] sm:$0xff]
        %v477 = vld [vmem:[%s371 + $0xb0] sm:$0xff]
        %v478 = vld [vmem:[%s371 + $0xb8] sm:$0xff]
        %v479 = vld [vmem:[%s371 + $0xc0] sm:$0xff]
        %v480 = vld [vmem:[%s371 + $0xc8] sm:$0xff]
        %v481 = vld [vmem:[%s371 + $0xd0] sm:$0xff]
        %v482 = vld [vmem:[%s371 + $0xd8] sm:$0xff]
        %v483 = vld [vmem:[%s371 + $0xe0] sm:$0xff]
        %v484 = vld [vmem:[%s371 + $0xe8] sm:$0xff]
        %v485 = vld [vmem:[%s371 + $0xf0] sm:$0xff]
        %v486 = vld [vmem:[%s371 + $0xf8] sm:$0xff]
        %v487 = vlaneseq
        %v488 = vshrl.u32 %v487, 7
        %v489 = vsub.s32 0, %v488
        %v490 = vrot.slane %v450, %v489
        %491 = vmatprep.subr.mxu0 0.0
        %492 = vmatpush1.msra.mxu0 %v455
        %493 = vmatprep.subr.mxu0 0.0
        %494 = vmatpush1.msra.mxu0 %v456
        %495 = vmatprep.subr.mxu0 0.0
        %496 = vmatpush1.msra.mxu0 %v457
        %497 = vmatprep.subr.mxu0 0.0
        %498 = vmatpush1.msra.mxu0 %v458
        %499 = vmatprep.subr.mxu0 0.0
        %500 = vmatpush1.msra.mxu0 %v459
        %501 = vmatprep.subr.mxu0 0.0
        %502 = vmatpush1.msra.mxu0 %v460
        %503 = vmatprep.subr.mxu0 0.0
        %504 = vmatpush1.msra.mxu0 %v461
        %505 = vmatprep.subr.mxu0 0.0
        %506 = vmatpush1.msra.mxu0 %v462
        %507 = vmatprep.subr.mxu0 0.0
        %508 = vmatpush1.msra.mxu0 %v463
        %509 = vmatprep.subr.mxu0 0.0
        %510 = vmatpush1.msra.mxu0 %v464
        %511 = vmatprep.subr.mxu0 0.0
        %512 = vmatpush1.msra.mxu0 %v465
        %513 = vmatprep.subr.mxu0 0.0
        %514 = vmatpush1.msra.mxu0 %v466
        %515 = vmatprep.subr.mxu0 0.0
        %516 = vmatpush1.msra.mxu0 %v467
        %517 = vmatprep.subr.mxu0 0.0
        %518 = vmatpush1.msra.mxu0 %v468
        %519 = vmatprep.subr.mxu0 0.0
        %520 = vmatpush1.msra.mxu0 %v469
        %521 = vmatprep.subr.mxu0 0.0
        %522 = vmatpush1.msra.mxu0 %v470
        %523 = vmatprep.subr.mxu0 0.0
        %524 = vmatpush1.msra.mxu0 %v471
        %525 = vmatprep.subr.mxu0 0.0
        %526 = vmatpush1.msra.mxu0 %v472
        %527 = vmatprep.subr.mxu0 0.0
        %528 = vmatpush1.msra.mxu0 %v473
        %529 = vmatprep.subr.mxu0 0.0
        %530 = vmatpush1.msra.mxu0 %v474
        %531 = vmatprep.subr.mxu0 0.0
        %532 = vmatpush1.msra.mxu0 %v475
        %533 = vmatprep.subr.mxu0 0.0
        %534 = vmatpush1.msra.mxu0 %v476
        %535 = vmatprep.subr.mxu0 0.0
        %536 = vmatpush1.msra.mxu0 %v477
        %537 = vmatprep.subr.mxu0 0.0
        %538 = vmatpush1.msra.mxu0 %v478
        %539 = vmatprep.subr.mxu0 0.0
        %540 = vmatpush1.msra.mxu0 %v479
        %541 = vmatprep.subr.mxu0 0.0
        %542 = vmatpush1.msra.mxu0 %v480
        %543 = vmatprep.subr.mxu0 0.0
        %544 = vmatpush1.msra.mxu0 %v481
        %545 = vmatprep.subr.mxu0 0.0
        %546 = vmatpush1.msra.mxu0 %v482
        %547 = vmatprep.subr.mxu0 0.0
        %548 = vmatpush1.msra.mxu0 %v483
        %549 = vmatprep.subr.mxu0 0.0
        %550 = vmatpush1.msra.mxu0 %v484
        %551 = vmatprep.subr.mxu0 0.0
        %552 = vmatpush1.msra.mxu0 %v485
        %553 = vmatprep.subr.mxu0 0.0
        %554 = vmatpush1.msra.mxu0 %v486
        %555 = vmatprep.mubr.f32.mxu0 %v452
        %556 = vmatmul.mubr.f32.gmra.mrb[0].mxu0 %v451
        %v557 = vpop.f32.mrb[0].mxu0
        %v558 = vadd.f32 %v490, %v557
        %v559 = vpop.f32.mrb[0].mxu0
        %560 = vmatprep.mubr.f32.mxu0 %v454
        %561 = vmatmul.mubr.f32.gmra.mrb[0].mxu0 %v453
        %v562 = vpop.f32.mrb[0].mxu0
        %v563 = vadd.f32 %v490, %v562
        %v564 = vpop.f32.mrb[0].mxu0
        %565 = vdwg.mxu0
        %566 = vadd.xlane.f32.xlu0 %v558
        %v567 = vpop.xlane.xlu0 %566
        %568 = vadd.xlane.f32.xlu0 %v563
        %v569 = vpop.xlane.xlu0 %568
        %v570 = vrcp.pop 128.0
        %v571 = vmul.f32 %v567, %v570
        %v572 = vmul.f32 %v569, %v570
        %v573 = vsub.f32 %v558, %v571
        %v574 = vsub.f32 %v563, %v572
        %v575 = vmul.f32 %v573, %v573
        %v576 = vmul.f32 %v574, %v574
        %577 = vadd.xlane.f32.xlu0 %v575
        %v578 = vpop.xlane.xlu0 %577
        %579 = vadd.xlane.f32.xlu0 %v576
        %v580 = vpop.xlane.xlu0 %579
        %v581 = vmul.f32 %v578, %v570
        %v582 = vmul.f32 %v580, %v570
        %v583 = vadd.f32 %v581, 1e-05
        %v584 = vadd.f32 %v582, 1e-05
        %v585 = vrsqrt.pop %v583
        %v586 = vrsqrt.pop %v584
        %v587 = vmul.f32 %v573, %v585
        %v588 = vmul.f32 %v574, %v586
        %v589 = vlaneseq
        %v590 = vshrl.u32 %v589, 7
        %v591 = vsub.s32 1, %v590
        %v592 = vrot.slane %v450, %v591
        %v593 = vmul.f32 %v587, %v592
        %v594 = vmul.f32 %v588, %v592
        %v595 = vlaneseq
        %v596 = vshrl.u32 %v595, 7
        %v597 = vsub.s32 2, %v596
        %v598 = vrot.slane %v450, %v597
        %v599 = vadd.f32 %v593, %v598
        %v600 = vadd.f32 %v594, %v598
        %v601 = vmul.f32 %v599, 0.5
        %v602 = vmul.f32 %v600, 0.5
        %v603 = vmul.f32 %v599, 0.70710677
        %v604 = vmul.f32 %v600, 0.70710677
        %v605 = verf.f32.pop %v603
        %v606 = verf.f32.pop %v604
        %v607 = vadd.f32 %v605, 1.0
        %v608 = vadd.f32 %v606, 1.0
        %v609 = vmul.f32 %v601, %v607
        %v610 = vmul.f32 %v602, %v608
        %v611 = vld [vmem:[%s380] sm:$0xff]
        %v612 = vld [vmem:[%s380 + $0x8] sm:$0xff]
        %v613 = vld [vmem:[%s380 + $0x10] sm:$0xff]
        %v614 = vld [vmem:[%s380 + $0x18] sm:$0xff]
        %v615 = vld [vmem:[%s380 + $0x20] sm:$0xff]
        %v616 = vld [vmem:[%s380 + $0x28] sm:$0xff]
        %v617 = vld [vmem:[%s380 + $0x30] sm:$0xff]
        %v618 = vld [vmem:[%s380 + $0x38] sm:$0xff]
        %v619 = vld [vmem:[%s380 + $0x40] sm:$0xff]
        %v620 = vld [vmem:[%s380 + $0x48] sm:$0xff]
        %v621 = vld [vmem:[%s380 + $0x50] sm:$0xff]
        %v622 = vld [vmem:[%s380 + $0x58] sm:$0xff]
        %v623 = vld [vmem:[%s380 + $0x60] sm:$0xff]
        %v624 = vld [vmem:[%s380 + $0x68] sm:$0xff]
        %v625 = vld [vmem:[%s380 + $0x70] sm:$0xff]
        %v626 = vld [vmem:[%s380 + $0x78] sm:$0xff]
        %v627 = vlaneseq
        %v628 = vshrl.u32 %v627, 7
        %v629 = vsub.s32 3, %v628
        %v630 = vrot.slane %v450, %v629
        %631 = vmatprep.subr.mxu0 0.0
        %632 = vmatpush1.msra.mxu0 %v611
        %633 = vmatprep.subr.mxu0 0.0
        %634 = vmatpush1.msra.mxu0 %v612
        %635 = vmatprep.subr.mxu0 0.0
        %636 = vmatpush1.msra.mxu0 %v613
        %637 = vmatprep.subr.mxu0 0.0
        %638 = vmatpush1.msra.mxu0 %v614
        %639 = vmatprep.subr.mxu0 0.0
        %640 = vmatpush1.msra.mxu0 %v615
        %641 = vmatprep.subr.mxu0 0.0
        %642 = vmatpush1.msra.mxu0 %v616
        %643 = vmatprep.subr.mxu0 0.0
        %644 = vmatpush1.msra.mxu0 %v617
        %645 = vmatprep.subr.mxu0 0.0
        %646 = vmatpush1.msra.mxu0 %v618
        %647 = vmatprep.subr.mxu0 0.0
        %648 = vmatpush1.msra.mxu0 %v619
        %649 = vmatprep.subr.mxu0 0.0
        %650 = vmatpush1.msra.mxu0 %v620
        %651 = vmatprep.subr.mxu0 0.0
        %652 = vmatpush1.msra.mxu0 %v621
        %653 = vmatprep.subr.mxu0 0.0
        %654 = vmatpush1.msra.mxu0 %v622
        %655 = vmatprep.subr.mxu0 0.0
        %656 = vmatpush1.msra.mxu0 %v623
        %657 = vmatprep.subr.mxu0 0.0
        %658 = vmatpush1.msra.mxu0 %v624
        %659 = vmatprep.subr.mxu0 0.0
        %660 = vmatpush1.msra.mxu0 %v625
        %661 = vmatprep.subr.mxu0 0.0
        %662 = vmatpush1.msra.mxu0 %v626
        %663 = vmatprep.subr.mxu0 0.0
        %664 = vmatpush1.msra.mxu0 0.0
        %665 = vmatprep.subr.mxu0 0.0
        %666 = vmatpush1.msra.mxu0 0.0
        %667 = vmatprep.subr.mxu0 0.0
        %668 = vmatpush1.msra.mxu0 0.0
        %669 = vmatprep.subr.mxu0 0.0
        %670 = vmatpush1.msra.mxu0 0.0
        %671 = vmatprep.subr.mxu0 0.0
        %672 = vmatpush1.msra.mxu0 0.0
        %673 = vmatprep.subr.mxu0 0.0
        %674 = vmatpush1.msra.mxu0 0.0
        %675 = vmatprep.subr.mxu0 0.0
        %676 = vmatpush1.msra.mxu0 0.0
        %677 = vmatprep.subr.mxu0 0.0
        %678 = vmatpush1.msra.mxu0 0.0
        %679 = vmatprep.subr.mxu0 0.0
        %680 = vmatpush1.msra.mxu0 0.0
        %681 = vmatprep.subr.mxu0 0.0
        %682 = vmatpush1.msra.mxu0 0.0
        %683 = vmatprep.subr.mxu0 0.0
        %684 = vmatpush1.msra.mxu0 0.0
        %685 = vmatprep.subr.mxu0 0.0
        %686 = vmatpush1.msra.mxu0 0.0
        %687 = vmatprep.subr.mxu0 0.0
        %688 = vmatpush1.msra.mxu0 0.0
        %689 = vmatprep.subr.mxu0 0.0
        %690 = vmatpush1.msra.mxu0 0.0
        %691 = vmatprep.subr.mxu0 0.0
        %692 = vmatpush1.msra.mxu0 0.0
        %693 = vmatprep.subr.mxu0 0.0
        %694 = vmatpush1.msra.mxu0 0.0
        %695 = vmatprep.mubr.f32.mxu0 0.0
        %696 = vmatmul.mubr.f32.gmra.mrb[0].mxu0 %v609
        %v697 = vpop.f32.mrb[0].mxu0
        %v698 = vadd.f32 %v630, %v697
        %v699 = vpop.f32.mrb[0].mxu0
        %700 = vmatprep.mubr.f32.mxu0 0.0
        %701 = vmatmul.mubr.f32.gmra.mrb[0].mxu0 %v610
        %v702 = vpop.f32.mrb[0].mxu0
        %v703 = vadd.f32 %v630, %v702
        %v704 = vpop.f32.mrb[0].mxu0
        %705 = vdwg.mxu0
        %706 = vadd.xlane.f32.xlu0 %v698
        %v707 = vpop.xlane.xlu0 %706
        %708 = vadd.xlane.f32.xlu0 %v703
        %v709 = vpop.xlane.xlu0 %708
        %v710 = vmul.f32 %v707, %v570
        %v711 = vmul.f32 %v709, %v570
        %v712 = vsub.f32 %v698, %v710
        %v713 = vsub.f32 %v703, %v711
        %v714 = vmul.f32 %v712, %v712
        %v715 = vmul.f32 %v713, %v713
        %716 = vadd.xlane.f32.xlu0 %v714
        %v717 = vpop.xlane.xlu0 %716
        %718 = vadd.xlane.f32.xlu0 %v715
        %v719 = vpop.xlane.xlu0 %718
        %v720 = vmul.f32 %v717, %v570
        %v721 = vmul.f32 %v719, %v570
        %v722 = vadd.f32 %v720, 1e-05
        %v723 = vadd.f32 %v721, 1e-05
        %v724 = vrsqrt.pop %v722
        %v725 = vrsqrt.pop %v723
        %v726 = vmul.f32 %v712, %v724
        %v727 = vmul.f32 %v713, %v725
        %v728 = vlaneseq
        %v729 = vshrl.u32 %v728, 7
        %v730 = vsub.s32 4, %v729
        %v731 = vrot.slane %v450, %v730
        %v732 = vmul.f32 %v726, %v731
        %v733 = vmul.f32 %v727, %v731
        %v734 = vlaneseq
        %v735 = vshrl.u32 %v734, 7
        %v736 = vsub.s32 5, %v735
        %v737 = vrot.slane %v450, %v736
        %v738 = vadd.f32 %v732, %v737
        %v739 = vadd.f32 %v733, %v737
        %v740 = vmul.f32 %v738, 0.5
        %v741 = vmul.f32 %v739, 0.5
        %v742 = vmul.f32 %v738, 0.70710677
        %v743 = vmul.f32 %v739, 0.70710677
        %v744 = verf.f32.pop %v742
        %v745 = verf.f32.pop %v743
        %v746 = vadd.f32 %v744, 1.0
        %v747 = vadd.f32 %v745, 1.0
        %v748 = vmul.f32 %v740, %v746
        %v749 = vmul.f32 %v741, %v747
        %v750 = vadd.f32 %v748, %v609
        %v751 = vadd.f32 %v749, %v610
        %v752 = vld [vmem:[%s389] sm:$0xff]
        %v753 = vld [vmem:[%s389 + $0x8] sm:$0xff]
        %v754 = vld [vmem:[%s389 + $0x10] sm:$0xff]
        %v755 = vld [vmem:[%s389 + $0x18] sm:$0xff]
        %v756 = vld [vmem:[%s389 + $0x20] sm:$0xff]
        %v757 = vld [vmem:[%s389 + $0x28] sm:$0xff]
        %v758 = vld [vmem:[%s389 + $0x30] sm:$0xff]
        %v759 = vld [vmem:[%s389 + $0x38] sm:$0xff]
        %v760 = vld [vmem:[%s389 + $0x40] sm:$0xff]
        %v761 = vld [vmem:[%s389 + $0x48] sm:$0xff]
        %v762 = vld [vmem:[%s389 + $0x50] sm:$0xff]
        %v763 = vld [vmem:[%s389 + $0x58] sm:$0xff]
        %v764 = vld [vmem:[%s389 + $0x60] sm:$0xff]
        %v765 = vld [vmem:[%s389 + $0x68] sm:$0xff]
        %v766 = vld [vmem:[%s389 + $0x70] sm:$0xff]
        %v767 = vld [vmem:[%s389 + $0x78] sm:$0xff]
        %v768 = vld [vmem:[%s448] sm:$0x1]
        %v770 = vlaneseq
        %v771 = vshrl.u32 %v770, 7
        %v772 = vsub.s32 0, %v771
        %v773 = vrot.slane %v768, %v772
        %775 = vmatprep.subr.mxu0 0.0
        %776 = vmatpush1.msra.mxu0 %v752
        %777 = vmatprep.subr.mxu0 0.0
        %778 = vmatpush1.msra.mxu0 %v753
        %779 = vmatprep.subr.mxu0 0.0
        %780 = vmatpush1.msra.mxu0 %v754
        %781 = vmatprep.subr.mxu0 0.0
        %782 = vmatpush1.msra.mxu0 %v755
        %783 = vmatprep.subr.mxu0 0.0
        %784 = vmatpush1.msra.mxu0 %v756
        %785 = vmatprep.subr.mxu0 0.0
        %786 = vmatpush1.msra.mxu0 %v757
        %787 = vmatprep.subr.mxu0 0.0
        %788 = vmatpush1.msra.mxu0 %v758
        %789 = vmatprep.subr.mxu0 0.0
        %790 = vmatpush1.msra.mxu0 %v759
        %791 = vmatprep.subr.mxu0 0.0
        %792 = vmatpush1.msra.mxu0 %v760
        %793 = vmatprep.subr.mxu0 0.0
        %794 = vmatpush1.msra.mxu0 %v761
        %795 = vmatprep.subr.mxu0 0.0
        %796 = vmatpush1.msra.mxu0 %v762
        %797 = vmatprep.subr.mxu0 0.0
        %798 = vmatpush1.msra.mxu0 %v763
        %799 = vmatprep.subr.mxu0 0.0
        %800 = vmatpush1.msra.mxu0 %v764
        %801 = vmatprep.subr.mxu0 0.0
        %802 = vmatpush1.msra.mxu0 %v765
        %803 = vmatprep.subr.mxu0 0.0
        %804 = vmatpush1.msra.mxu0 %v766
        %805 = vmatprep.subr.mxu0 0.0
        %806 = vmatpush1.msra.mxu0 %v767
        %807 = vmatprep.subr.mxu0 0.0
        %808 = vmatpush1.msra.mxu0 0.0
        %809 = vmatprep.subr.mxu0 0.0
        %810 = vmatpush1.msra.mxu0 0.0
        %811 = vmatprep.subr.mxu0 0.0
        %812 = vmatpush1.msra.mxu0 0.0
        %813 = vmatprep.subr.mxu0 0.0
        %814 = vmatpush1.msra.mxu0 0.0
        %815 = vmatprep.subr.mxu0 0.0
        %816 = vmatpush1.msra.mxu0 0.0
        %817 = vmatprep.subr.mxu0 0.0
        %818 = vmatpush1.msra.mxu0 0.0
        %819 = vmatprep.subr.mxu0 0.0
        %820 = vmatpush1.msra.mxu0 0.0
        %821 = vmatprep.subr.mxu0 0.0
        %822 = vmatpush1.msra.mxu0 0.0
        %823 = vmatprep.subr.mxu0 0.0
        %824 = vmatpush1.msra.mxu0 0.0
        %825 = vmatprep.subr.mxu0 0.0
        %826 = vmatpush1.msra.mxu0 0.0
        %827 = vmatprep.subr.mxu0 0.0
        %828 = vmatpush1.msra.mxu0 0.0
        %829 = vmatprep.subr.mxu0 0.0
        %830 = vmatpush1.msra.mxu0 0.0
        %831 = vmatprep.subr.mxu0 0.0
        %832 = vmatpush1.msra.mxu0 0.0
        %833 = vmatprep.subr.mxu0 0.0
        %834 = vmatpush1.msra.mxu0 0.0
        %835 = vmatprep.subr.mxu0 0.0
        %836 = vmatpush1.msra.mxu0 0.0
        %837 = vmatprep.subr.mxu0 0.0
        %838 = vmatpush1.msra.mxu0 0.0
        %839 = vmatprep.mubr.f32.mxu0 0.0
        %840 = vmatmul.mubr.f32.gmra.mrb[0].mxu0 %v750
        %v841 = vpop.f32.mrb[0].mxu0
        %v842 = vadd.f32 %v773, %v841
        %v843 = vpop.f32.mrb[0].mxu0
        %844 = vmatprep.mubr.f32.mxu0 0.0
        %845 = vmatmul.mubr.f32.gmra.mrb[0].mxu0 %v751
        %v846 = vpop.f32.mrb[0].mxu0
        %v847 = vadd.f32 %v773, %v846
        %v848 = vpop.f32.mrb[0].mxu0
        %849 = vdwg.mxu0
        %850 = vst [vmem:[%s439] sm:$0xff] %v842
        %851 = vst [vmem:[%s439 + $0x8] sm:$0xff] %v847
        %s852 = sand.u32 %s218, 1
        %s853 = scalar_lea.sflag [#allocation6], %s852
        %s854 = sand.u32 %s218, 1
        %s855 = smul.addr %s854, 16
        %s856 = scalar_lea.vmem [#allocation12], %s855
        // Predicated region
        $region61: #{tpu_custom_call.1} parent=43 // pred_check
          %p857 = pneg %p228
        $region62: #{tpu_custom_call.1} parent=43 // pred_check_branch
          %859 = sbr.rel (%p857) target = $region64
        $region63: #{tpu_custom_call.1} parent=43 // pred_region
          %s860 = smul.u32 2, %s41
          %s862 = ssub.s32 256, 256
          %863 = vsyncadd %s853, %s862
          %s864 = smul.addr %s40, 2
          %s865 = sadd.s32 %s860, %s864
          %s866 = smul.addr %s865, 128
          %s867 = scalar_lea.hbm %s7, %s866
          %s868 = sshll.u32 %s856, 4
          %s869 = int_to_ptr.vmem [resolvable:$true] %s868
          %874 = dma.vmem_to_hbm [thread:$0]  %s869, 256, %s867, %s853, 128, 128, 8
        $region64: #{tpu_custom_call.1} parent=43 // pred_fallthru
          _
      $region44: #{tpu_custom_call.1} parent=5 // pred_fallthru
        _
      %p875 = scmp.le.s32.totalorder 2, %s31
      // Predicated region
      $region65: #{tpu_custom_call.1} parent=5 // pred_check
        %p876 = pneg %p875
      $region66: #{tpu_custom_call.1} parent=5 // pred_check_branch
        %878 = sbr.rel (%p876) target = $region68
      $region67: #{tpu_custom_call.1} parent=5 // pred_region
        %s879 = ssub.s32 %s31, 2
        // Predicated region
        $region69: #{tpu_custom_call.1} parent=67 // pred_check
          %p880 = pneg %p234
        $region70: #{tpu_custom_call.1} parent=67 // pred_check_branch
          %882 = sbr.rel (%p880) target = $region72
        $region71: #{tpu_custom_call.1} parent=67 // pred_region
          %s883 = sand.u32 %s219, 1
          %s884 = scalar_lea.sflag [#allocation6], %s883
          %s885 = sand.u32 %s219, 1
          %s886 = smul.addr %s885, 16
          %s887 = scalar_lea.vmem [#allocation12], %s886
          %888 = dma.done %s884, 256
        $region72: #{tpu_custom_call.1} parent=67 // pred_fallthru
          _
      $region68: #{tpu_custom_call.1} parent=5 // pred_fallthru
        _
    $region6: #{tpu_custom_call.1} parent=1 // loop_footer
      %s35 = sadd.s32 1, %s31
    $region7: #{tpu_custom_call.1} parent=1 // loop_footer_branch
      %30 = sbr.rel target = $region3
    $region8: #{tpu_custom_call.1} parent=1 // loop_exit
      _
    %889 = vsyncpa [#allocation5], 1
    %s890 = scalar_lea.sflag [#allocation5], 1
    %891 = vsyncpa %s890, 1
    %892 = vsyncpa [#allocation8], 1
    %s893 = scalar_lea.sflag [#allocation8], 1
    %894 = vsyncpa %s893, 1
    %895 = vsyncpa [#allocation11], 1
    %s896 = scalar_lea.sflag [#allocation11], 1
    %897 = vsyncpa %s896, 1
    %898 = vsyncpa [#allocation6], 1
    %s899 = scalar_lea.sflag [#allocation6], 1
    %900 = vsyncpa %s899, 1

</llo_original>
